<compile_context>
chip_gen: v5e
topology: v5e:2x2
jax: 0.10.0
libtpu: 0.0.40
codegen_flags: <defaults>
</compile_context>

<pallas_src>
import jax
import jax.numpy as jnp
from jax.experimental import pallas as pl
from jax.experimental.pallas import tpu as pltpu


# --------------------------------------------------------------------------
# Pallas kernel: fused affinity + hierarchical accumulation + softmax + AV
# --------------------------------------------------------------------------
def _make_nstack_kernel(need_weights):
    def kernel(q_ref, kt_ref, v_ref, nv_ref, w_ref, spans_ref, *refs):
        if need_weights:
            out_ref, wgt_ref = refs[0], refs[1]
            w2_scr, nvo_scr = refs[2], refs[3]
        else:
            out_ref, wgt_ref = refs[0], None
            w2_scr, nvo_scr = refs[1], refs[2]

        f32, bf16 = jnp.float32, jnp.bfloat16
        h, tq, d = q_ref.shape[1], q_ref.shape[2], q_ref.shape[3]
        n = v_ref.shape[2]
        m = nv_ref.shape[2]

        # ---- once per batch element (t-tile 0): build the hierarchical -------
        # ---- accumulation operators and accumulated node values; cache -------
        # ---- them in VMEM scratch for the remaining t tiles.           -------
        @pl.when(pl.program_id(1) == 0)
        def _():
            # Rebuild the (transposed) ntree mask from spans:
            # maskT[j, i] = (i >= start_j) ^ (i > end_j)  (== get_ntree_mask[i, j])
            starts = spans_ref[0, :, 0:1]                        # (m, 1) int32
            ends = spans_ref[0, :, 1:2]                          # (m, 1) int32
            rg = jax.lax.broadcasted_iota(jnp.int32, (m, n), 1)
            maskT = jnp.logical_xor(rg >= starts, rg > ends)
            maskT = jnp.logical_and(maskT, starts <= ends)       # guard padded spans
            maskT_f = maskT.astype(f32)
            maskT_bf = maskT_f.astype(bf16)

            w = w_ref[0]                                         # (h, n) f32
            wmT = (w[:, None, :] * maskT_f[None]).astype(bf16)   # (h, m, n)

            # A[h,j,k] = sum_i w[h,i] * mask[i,j] * mask[i,k]  (2-D trans_b dot)
            A = jax.lax.dot_general(
                wmT.reshape(h * m, n), maskT_bf,
                dimension_numbers=(((1,), (1,)), ((), ())),
                preferred_element_type=f32).reshape(h, m, m)
            row = jax.lax.broadcasted_iota(jnp.int32, (m, m), 0)
            col = jax.lax.broadcasted_iota(jnp.int32, (m, m), 1)
            # inclusive upward cumsum (j' <= j) -> lower triangle incl. diagonal
            A_low = jnp.where((row >= col)[None], A, 0.0).astype(bf16)

            # Fused operator W2 = [w*mask^T | A_low]:  wgt_no = scores @ W2^T
            w2_scr[...] = jnp.concatenate([wmT, A_low], axis=-1)  # (h, m, n+m)

            # nstree-accumulated node values (hier_embed=None)
            nvo = (jnp.einsum('hjn,hnd->hjd', wmT, v_ref[0],
                              preferred_element_type=f32)
                   + jnp.einsum('hjk,hkd->hjd', A_low, nv_ref[0],
                                preferred_element_type=f32))      # (h, m, d)
            nvo_scr[...] = nvo.astype(bf16)

        # ---- per (batch, t-tile): fused scores over [leaves | nodes] ---------
        q = q_ref[0]            # (h, tq, d)   bf16, pre-scaled by head_dim**-0.5
        kt = kt_ref[0]          # (h, d, n+m)  bf16, fused [K | node_K]
        scores = jnp.einsum('htd,hdc->htc', q, kt,
                            preferred_element_type=f32)           # (h, tq, n+m)
        attn_le = scores[:, :, :n]                                # leaf logits
        # nstree-accumulated node logits (wnstack_norm / wnstack_up_norm == 'none')
        wgt_no = jnp.einsum('htc,hjc->htj', scores.astype(bf16), w2_scr[...],
                            preferred_element_type=f32)           # (h, tq, m)

        # TODO(synk): nstack_mask_func (MergeWeightMask fname='default') with
        # pad_mask=None is the identity; key/node padding masks and other masking
        # variants are not reproduced.

        # ---- two-piece softmax over [leaves | nodes] (no logits concatenate) --
        mx = jnp.maximum(jnp.max(attn_le, axis=-1, keepdims=True),
                         jnp.max(wgt_no, axis=-1, keepdims=True))
        e_le = jnp.exp(attn_le - mx)
        e_no = jnp.exp(wgt_no - mx)
        denom = (jnp.sum(e_le, axis=-1, keepdims=True)
                 + jnp.sum(e_no, axis=-1, keepdims=True))
        # exact reciprocal when the (head-averaged) probabilities are returned
        inv = pl.reciprocal(denom, approx=not need_weights)
        p_le = e_le * inv
        p_no = e_no * inv
        # dropout p=0.0 -> identity

        # ---- context: p @ [v ; node_v_out], emitted lane-dense as (tq, h*d) ---
        ctx = (jnp.einsum('htn,hnd->htd', p_le.astype(bf16), v_ref[0],
                          preferred_element_type=f32)
               + jnp.einsum('htm,hmd->htd', p_no.astype(bf16), nvo_scr[...],
                            preferred_element_type=f32))          # (h, tq, d)
        out_ref[0] = jnp.concatenate([ctx[j] for j in range(h)],
                                     axis=-1).astype(out_ref.dtype)

        if need_weights:
            inv_h = 1.0 / h
            wgt_ref[0] = (jnp.concatenate([jnp.sum(p_le, axis=0),
                                           jnp.sum(p_no, axis=0)], axis=-1)
                          * inv_h)                                # (tq, n+m)

    return kernel


def _pick_q_tile(t, target=512):
    """Largest 8-aligned tile <= target that divides t (else a single full tile).

    target defaults to 512 (multiple of 256 -> full MXU granule on v6e/v7x)."""
    if t <= target:
        return t
    for cand in range(target - (target % 8), 7, -8):
        if t % cand == 0:
            return cand
    return t


def _vmem_limit_bytes():
    # ~0.75 * physical VMEM, capped at 100 MiB: ~96 MiB on v5e/v6e, ~48 MiB on v7x.
    try:
        cap = pltpu.get_tpu_info().vmem_capacity_bytes
    except Exception:
        cap = 64 * 1024 * 1024
    return min(int(cap * 3 // 4), 100 * 1024 * 1024)


def nstack_attention_core(q, kt, v, nv, w, spans, need_weights=True, q_tile=512):
    """q: (b,h,t,d); kt: (b,h,d,n+m); v: (b,h,n,d); nv: (b,h,m,d) — all bf16.
    w: (b,h,n) f32 right_weight; spans: (b,m,2) int32."""
    b, h, t, d = q.shape
    n = v.shape[2]
    m = nv.shape[2]
    c = n + m
    E = h * d
    tq = _pick_q_tile(t, q_tile)
    nt = t // tq

    in_specs = [
        pl.BlockSpec((1, h, tq, d), lambda i, j: (i, 0, j, 0)),   # q (tiled on t)
        pl.BlockSpec((1, h, d, c), lambda i, j: (i, 0, 0, 0)),    # fused keys^T
        pl.BlockSpec((1, h, n, d), lambda i, j: (i, 0, 0, 0)),    # v
        pl.BlockSpec((1, h, m, d), lambda i, j: (i, 0, 0, 0)),    # node_v
        pl.BlockSpec((1, h, n), lambda i, j: (i, 0, 0)),          # right_weight
        pl.BlockSpec((1, m, 2), lambda i, j: (i, 0, 0)),          # spans
    ]
    out_shapes = [jax.ShapeDtypeStruct((b, t, E), jnp.bfloat16)]  # lane-dense ctx
    out_specs = [pl.BlockSpec((1, tq, E), lambda i, j: (i, j, 0))]
    if need_weights:
        out_shapes.append(jax.ShapeDtypeStruct((b, t, c), jnp.float32))
        out_specs.append(pl.BlockSpec((1, tq, c), lambda i, j: (i, j, 0)))

    return pl.pallas_call(
        _make_nstack_kernel(need_weights),
        out_shape=tuple(out_shapes),
        grid_spec=pltpu.PrefetchScalarGridSpec(
            num_scalar_prefetch=0,
            grid=(b, nt),                       # b outer, t inner (keys stay resident)
            in_specs=in_specs,
            out_specs=out_specs,
            scratch_shapes=[pltpu.VMEM((h, m, c), jnp.bfloat16),   # W2 = [wm^T | A_low]
                            pltpu.VMEM((h, m, d), jnp.bfloat16)],  # accumulated node_v
        ),
        # t axis is "arbitrary": per-batch operators are cached in scratch at
        # t-tile 0 and reused by the remaining tiles of the same batch element.
        compiler_params=pltpu.CompilerParams(
            dimension_semantics=("parallel", "arbitrary"),
            vmem_limit_bytes=_vmem_limit_bytes(),
        ),
    )(q, kt, v, nv, w, spans)


# --------------------------------------------------------------------------
# Parameter init (deterministic, matches reset_parameters semantics)
# --------------------------------------------------------------------------
def _xavier_uniform(key, shape):
    fan_out, fan_in = shape
    limit = (6.0 / (fan_in + fan_out)) ** 0.5
    return jax.random.uniform(key, shape, jnp.float32, -limit, limit)


def init_params(key, embed_dim, num_heads):
    k1, k2, k3 = jax.random.split(key, 3)
    return dict(
        in_proj_weight=_xavier_uniform(k1, (3 * embed_dim, embed_dim)),
        in_proj_bias=jnp.zeros((3 * embed_dim,), jnp.float32),
        out_proj_weight=_xavier_uniform(k2, (embed_dim, embed_dim)),
        out_proj_bias=jnp.zeros((embed_dim,), jnp.float32),
        dwstack_weight=_xavier_uniform(k3, (num_heads, embed_dim)),
        dwstack_bias=jnp.zeros((num_heads,), jnp.float32),
    )


# --------------------------------------------------------------------------
# Forward (glue in plain JAX, hot path in the Pallas kernel)
# --------------------------------------------------------------------------
def merge_stack_attention_forward(params, query, key, value, node_key, node_value,
                                  spans, num_heads, need_weights=True):
    t, b, E = query.shape
    n = key.shape[0]
    m = node_key.shape[0]
    h = num_heads
    d = E // h
    scaling = d ** -0.5

    W = params['in_proj_weight']
    bias = params['in_proj_bias']

    # in_proj_q / in_proj_kv  (kv_same / node_kv_same path)
    q = query @ W[:E].T + bias[:E]
    kv = key @ W[E:].T + bias[E:]
    k_, v_ = jnp.split(kv, 2, axis=-1)
    nkv = node_key @ W[E:].T + bias[E:]
    nk_, nv_ = jnp.split(nkv, 2, axis=-1)
    q = q * scaling

    def to_bhld(x, L):
        # (L, b, E) -> (b, h, L, d); bf16 operands (f32 accumulation in-kernel)
        return x.reshape(L, b, h, d).transpose(1, 2, 0, 3).astype(jnp.bfloat16)

    def to_bhdl(x, L):
        # (L, b, E) -> (b, h, d, L): contraction dim d in the middle, L lane-dense
        return x.reshape(L, b, h, d).transpose(1, 2, 3, 0).astype(jnp.bfloat16)

    qb = to_bhld(q, t)                               # (b, h, t, d)
    vb = to_bhld(v_, n)                              # (b, h, n, d)
    nvb = to_bhld(nv_, m)                            # (b, h, m, d)
    # fused, pre-transposed [K | node_K]: (b, h, d, n+m)
    ktb = jnp.concatenate([to_bhdl(k_, n), to_bhdl(nk_, m)], axis=-1)

    # right_weight = dwstack_linear(key)  (dwstack_proj_act='none'), lane-dense
    rw = key @ params['dwstack_weight'].T + params['dwstack_bias']   # (n, b, h)
    rw = rw.transpose(1, 2, 0)                                       # (b, h, n) f32

    spans_i32 = spans.astype(jnp.int32)                              # (b, m, 2)

    outs = nstack_attention_core(qb, ktb, vb, nvb, rw, spans_i32,
                                 need_weights=need_weights)
    ctx = outs[0]                                    # (b, t, E) bf16, head-concat

    # out projection (the (b,h,t,d)->(t,b,E) head merge is now done in-kernel)
    attn = ctx.astype(jnp.float32).transpose(1, 0, 2)                # (t, b, E)
    attn = attn @ params['out_proj_weight'].T + params['out_proj_bias']

    attn_weights = outs[1] if need_weights else None                 # (b, t, n+m)
    return attn, attn_weights


if __name__ == "__main__":
    b, h, E = 2, 4, 32
    d = E // h
    n, m = 8, 8
    t = n + m  # docstring: t = m + n

    key0 = jax.random.PRNGKey(0)
    kp, kq, kk, knk, ksp = jax.random.split(key0, 5)

    params = init_params(kp, E, h)
    query = jax.random.normal(kq, (t, b, E), jnp.float32)
    key_in = jax.random.normal(kk, (n, b, E), jnp.float32)
    value_in = key_in                 # kv_same path
    node_key = jax.random.normal(knk, (m, b, E), jnp.float32)
    node_value = node_key             # node_kv_same path

    # synthetic tree spans: node j covers contiguous leaves [start, end]
    starts = jax.random.randint(ksp, (b, m), 0, n)
    lens = jax.random.randint(jax.random.fold_in(ksp, 1), (b, m), 1, 4)
    ends = jnp.clip(starts + lens, 0, n - 1)
    spans = jnp.stack([starts, ends], axis=-1)      # (b, m, 2)

    attn, attn_weights = merge_stack_attention_forward(
        params, query, key_in, value_in, node_key, node_value, spans, h)
    jax.block_until_ready((attn, attn_weights))

    assert attn.shape == (t, b, E)
    assert attn_weights.shape == (b, t, n + m)
    assert not bool(jnp.isnan(attn).any())
    assert not bool(jnp.isnan(attn_weights).any())
    print("KERNEL_OK")
</pallas_src>

<mosaic_0001>
module attributes {stable_mosaic.version = 11 : i64} {
  func.func @kernel(%arg0: i32, %arg1: i32, %arg2: memref<1x4x16x8xbf16, #tpu.memory_space<vmem>>, %arg3: memref<1x4x8x16xbf16, #tpu.memory_space<vmem>>, %arg4: memref<1x4x8x8xbf16, #tpu.memory_space<vmem>>, %arg5: memref<1x4x8x8xbf16, #tpu.memory_space<vmem>>, %arg6: memref<1x4x8xf32, #tpu.memory_space<vmem>>, %arg7: memref<1x8x2xi32, #tpu.memory_space<vmem>>, %arg8: memref<1x16x32xbf16, #tpu.memory_space<vmem>>, %arg9: memref<1x16x16xf32, #tpu.memory_space<vmem>>, %arg10: memref<4x8x16xbf16, #tpu.memory_space<vmem>>, %arg11: memref<4x8x8xbf16, #tpu.memory_space<vmem>>) attributes {dimension_semantics = [#tpu.dimension_semantics<parallel>, #tpu.dimension_semantics<arbitrary>], iteration_bounds = array<i64: 2, 1>, scalar_prefetch = 0 : i64, scratch_operands = 2 : i64, tpu.core_type = #tpu.core_type<tc>, window_params = [{transform_indices = @transform_0, window_bounds = array<i64: 1, 4, 16, 8>}, {transform_indices = @transform_1, window_bounds = array<i64: 1, 4, 8, 16>}, {transform_indices = @transform_2, window_bounds = array<i64: 1, 4, 8, 8>}, {transform_indices = @transform_3, window_bounds = array<i64: 1, 4, 8, 8>}, {transform_indices = @transform_4, window_bounds = array<i64: 1, 4, 8>}, {transform_indices = @transform_5, window_bounds = array<i64: 1, 8, 2>}, {transform_indices = @transform_6, window_bounds = array<i64: 1, 16, 32>}, {transform_indices = @transform_7, window_bounds = array<i64: 1, 16, 16>}]} {
    %c0_i32 = arith.constant 0 : i32
    %0 = arith.cmpi eq, %arg1, %c0_i32 : i32
    %1 = arith.extui %0 : i1 to i32
    %c0_i32_0 = arith.constant 0 : i32
    %2 = arith.cmpi ne, %1, %c0_i32_0 : i32
    scf.if %2 {
      %c0_34 = arith.constant 0 : index
      %c0_35 = arith.constant 0 : index
      %c0_36 = arith.constant 0 : index
      %62 = vector.load %arg7[%c0_34, %c0_35, %c0_36] : memref<1x8x2xi32, #tpu.memory_space<vmem>>, vector<1x8x1xi32>
      %63 = vector.shape_cast %62 : vector<1x8x1xi32> to vector<8x1xi32>
      %c0_37 = arith.constant 0 : index
      %c0_38 = arith.constant 0 : index
      %c1 = arith.constant 1 : index
      %64 = vector.load %arg7[%c0_37, %c0_38, %c1] : memref<1x8x2xi32, #tpu.memory_space<vmem>>, vector<1x8x1xi32>
      %65 = vector.shape_cast %64 : vector<1x8x1xi32> to vector<8x1xi32>
      %66 = tpu.iota {dimensions = array<i32: 1>} : vector<8x8xi32>
      %67 = vector.broadcast %63 : vector<8x1xi32> to vector<8x8xi32>
      %68 = arith.cmpi sge, %66, %67 : vector<8x8xi32>
      %69 = vector.broadcast %65 : vector<8x1xi32> to vector<8x8xi32>
      %70 = arith.cmpi sgt, %66, %69 : vector<8x8xi32>
      %71 = arith.xori %68, %70 : vector<8x8xi1>
      %72 = arith.cmpi sle, %63, %65 : vector<8x1xi32>
      %73 = vector.broadcast %72 : vector<8x1xi1> to vector<8x8xi1>
      %74 = arith.andi %71, %73 : vector<8x8xi1>
      %75 = arith.extui %74 : vector<8x8xi1> to vector<8x8xi32>
      %76 = arith.sitofp %75 : vector<8x8xi32> to vector<8x8xf32>
      %77 = arith.truncf %76 : vector<8x8xf32> to vector<8x8xbf16>
      %c0_39 = arith.constant 0 : index
      %c0_40 = arith.constant 0 : index
      %c0_41 = arith.constant 0 : index
      %78 = vector.load %arg6[%c0_39, %c0_40, %c0_41] : memref<1x4x8xf32, #tpu.memory_space<vmem>>, vector<1x4x8xf32>
      %79 = vector.shape_cast %78 : vector<1x4x8xf32> to vector<4x8xf32>
      %80 = vector.shape_cast %79 : vector<4x8xf32> to vector<4x1x8xf32>
      %81 = vector.shape_cast %76 : vector<8x8xf32> to vector<1x8x8xf32>
      %82 = vector.broadcast %80 : vector<4x1x8xf32> to vector<4x8x8xf32>
      %83 = vector.broadcast %81 : vector<1x8x8xf32> to vector<4x8x8xf32>
      %84 = arith.mulf %82, %83 : vector<4x8x8xf32>
      %85 = arith.truncf %84 : vector<4x8x8xf32> to vector<4x8x8xbf16>
      %86 = vector.shape_cast %85 : vector<4x8x8xbf16> to vector<32x8xbf16>
      %cst_42 = arith.constant dense<0.000000e+00> : vector<32x8xf32>
      %87 = tpu.matmul %86, %77, %cst_42 {dimension_numbers = #tpu.dot_dimension_numbers<[1], [1], [0], [0], [0, 0, 1, 0], [], []>} : vector<32x8xbf16>, vector<8x8xbf16>, vector<32x8xf32> -> vector<32x8xf32>
      %88 = vector.shape_cast %87 : vector<32x8xf32> to vector<4x8x8xf32>
      %89 = tpu.iota {dimensions = array<i32: 0>} : vector<8x8xi32>
      %90 = tpu.iota {dimensions = array<i32: 1>} : vector<8x8xi32>
      %91 = arith.cmpi sge, %89, %90 : vector<8x8xi32>
      %92 = vector.shape_cast %91 : vector<8x8xi1> to vector<1x8x8xi1>
      %cst_43 = arith.constant 0.000000e+00 : f32
      %93 = vector.shape_cast %92 : vector<1x8x8xi1> to vector<1x8x8xi1>
      %94 = vector.broadcast %93 : vector<1x8x8xi1> to vector<4x8x8xi1>
      %95 = vector.broadcast %cst_43 : f32 to vector<4x8x8xf32>
      %96 = arith.select %94, %88, %95 : vector<4x8x8xi1>, vector<4x8x8xf32>
      %97 = arith.truncf %96 : vector<4x8x8xf32> to vector<4x8x8xbf16>
      %98 = tpu.concatenate %85, %97 in 2 : vector<4x8x8xbf16>, vector<4x8x8xbf16> -> vector<4x8x16xbf16>
      %c0_44 = arith.constant 0 : index
      %c0_45 = arith.constant 0 : index
      %c0_46 = arith.constant 0 : index
      %99 = vector.load %arg10[%c0_44, %c0_45, %c0_46] : memref<4x8x16xbf16, #tpu.memory_space<vmem>>, vector<4x8x16xbf16>
      tpu.vector_store %arg10[%c0_44, %c0_45, %c0_46], %98 {strides = array<i32>} : memref<4x8x16xbf16, #tpu.memory_space<vmem>>, vector<4x8x16xbf16>,
      %c0_47 = arith.constant 0 : index
      %c0_48 = arith.constant 0 : index
      %c0_49 = arith.constant 0 : index
      %c0_50 = arith.constant 0 : index
      %100 = vector.load %arg4[%c0_47, %c0_48, %c0_49, %c0_50] : memref<1x4x8x8xbf16, #tpu.memory_space<vmem>>, vector<1x4x8x8xbf16>
      %101 = vector.shape_cast %100 : vector<1x4x8x8xbf16> to vector<4x8x8xbf16>
      "tpu.trace_start"() <{level = 10 : i32, message = "hjn,hnd->hjd"}> : () -> ()
      %cst_51 = arith.constant dense<0.000000e+00> : vector<4x8x8xf32>
      %102 = tpu.matmul %85, %101, %cst_51 {dimension_numbers = #tpu.dot_dimension_numbers<[2], [1], [1], [2], [0, 0, 0, 1, 1, 2], [0], [0]>} : vector<4x8x8xbf16>, vector<4x8x8xbf16>, vector<4x8x8xf32> -> vector<4x8x8xf32>
      "tpu.trace_stop"() : () -> ()
      %c0_52 = arith.constant 0 : index
      %c0_53 = arith.constant 0 : index
      %c0_54 = arith.constant 0 : index
      %c0_55 = arith.constant 0 : index
      %103 = vector.load %arg5[%c0_52, %c0_53, %c0_54, %c0_55] : memref<1x4x8x8xbf16, #tpu.memory_space<vmem>>, vector<1x4x8x8xbf16>
      %104 = vector.shape_cast %103 : vector<1x4x8x8xbf16> to vector<4x8x8xbf16>
      "tpu.trace_start"() <{level = 10 : i32, message = "hjk,hkd->hjd"}> : () -> ()
      %cst_56 = arith.constant dense<0.000000e+00> : vector<4x8x8xf32>
      %105 = tpu.matmul %97, %104, %cst_56 {dimension_numbers = #tpu.dot_dimension_numbers<[2], [1], [1], [2], [0, 0, 0, 1, 1, 2], [0], [0]>} : vector<4x8x8xbf16>, vector<4x8x8xbf16>, vector<4x8x8xf32> -> vector<4x8x8xf32>
      "tpu.trace_stop"() : () -> ()
      %106 = arith.addf %102, %105 : vector<4x8x8xf32>
      %107 = arith.truncf %106 : vector<4x8x8xf32> to vector<4x8x8xbf16>
      %c0_57 = arith.constant 0 : index
      %c0_58 = arith.constant 0 : index
      %c0_59 = arith.constant 0 : index
      %108 = vector.load %arg11[%c0_57, %c0_58, %c0_59] : memref<4x8x8xbf16, #tpu.memory_space<vmem>>, vector<4x8x8xbf16>
      tpu.vector_store %arg11[%c0_57, %c0_58, %c0_59], %107 {strides = array<i32>} : memref<4x8x8xbf16, #tpu.memory_space<vmem>>, vector<4x8x8xbf16>,
    } else {
    }
    %c0 = arith.constant 0 : index
    %c0_1 = arith.constant 0 : index
    %c0_2 = arith.constant 0 : index
    %c0_3 = arith.constant 0 : index
    %3 = vector.load %arg2[%c0, %c0_1, %c0_2, %c0_3] : memref<1x4x16x8xbf16, #tpu.memory_space<vmem>>, vector<1x4x16x8xbf16>
    %4 = vector.shape_cast %3 : vector<1x4x16x8xbf16> to vector<4x16x8xbf16>
    %c0_4 = arith.constant 0 : index
    %c0_5 = arith.constant 0 : index
    %c0_6 = arith.constant 0 : index
    %c0_7 = arith.constant 0 : index
    %5 = vector.load %arg3[%c0_4, %c0_5, %c0_6, %c0_7] : memref<1x4x8x16xbf16, #tpu.memory_space<vmem>>, vector<1x4x8x16xbf16>
    %6 = vector.shape_cast %5 : vector<1x4x8x16xbf16> to vector<4x8x16xbf16>
    "tpu.trace_start"() <{level = 10 : i32, message = "htd,hdc->htc"}> : () -> ()
    %cst = arith.constant dense<0.000000e+00> : vector<4x16x16xf32>
    %7 = tpu.matmul %4, %6, %cst {dimension_numbers = #tpu.dot_dimension_numbers<[2], [1], [1], [2], [0, 0, 0, 1, 1, 2], [0], [0]>} : vector<4x16x8xbf16>, vector<4x8x16xbf16>, vector<4x16x16xf32> -> vector<4x16x16xf32>
    "tpu.trace_stop"() : () -> ()
    %8 = vector.extract_strided_slice %7 {offsets = [0, 0, 0], sizes = [4, 16, 8], strides = [1, 1, 1]} : vector<4x16x16xf32> to vector<4x16x8xf32>
    %9 = arith.truncf %7 : vector<4x16x16xf32> to vector<4x16x16xbf16>
    %c0_8 = arith.constant 0 : index
    %c0_9 = arith.constant 0 : index
    %c0_10 = arith.constant 0 : index
    %10 = vector.load %arg10[%c0_8, %c0_9, %c0_10] : memref<4x8x16xbf16, #tpu.memory_space<vmem>>, vector<4x8x16xbf16>
    "tpu.trace_start"() <{level = 10 : i32, message = "htc,hjc->htj"}> : () -> ()
    %cst_11 = arith.constant dense<0.000000e+00> : vector<4x16x8xf32>
    %11 = tpu.matmul %9, %10, %cst_11 {dimension_numbers = #tpu.dot_dimension_numbers<[2], [2], [1], [1], [0, 0, 0, 1, 1, 1], [0], [0]>} : vector<4x16x16xbf16>, vector<4x8x16xbf16>, vector<4x16x8xf32> -> vector<4x16x8xf32>
    "tpu.trace_stop"() : () -> ()
    %cst_12 = arith.constant dense<0xFF800000> : vector<4x16xf32>
    %12 = vector.multi_reduction <maximumf>, %8, %cst_12 [2] : vector<4x16x8xf32> to vector<4x16xf32>
    %13 = vector.shape_cast %12 : vector<4x16xf32> to vector<4x16x1xf32>
    %cst_13 = arith.constant dense<0xFF800000> : vector<4x16xf32>
    %14 = vector.multi_reduction <maximumf>, %11, %cst_13 [2] : vector<4x16x8xf32> to vector<4x16xf32>
    %15 = vector.shape_cast %14 : vector<4x16xf32> to vector<4x16x1xf32>
    %16 = arith.maximumf %13, %15 : vector<4x16x1xf32>
    %17 = vector.broadcast %16 : vector<4x16x1xf32> to vector<4x16x8xf32>
    %18 = arith.subf %8, %17 : vector<4x16x8xf32>
    %19 = math.exp %18 : vector<4x16x8xf32>
    %20 = vector.broadcast %16 : vector<4x16x1xf32> to vector<4x16x8xf32>
    %21 = arith.subf %11, %20 : vector<4x16x8xf32>
    %22 = math.exp %21 : vector<4x16x8xf32>
    %cst_14 = arith.constant dense<0.000000e+00> : vector<4x16xf32>
    %23 = vector.multi_reduction <add>, %19, %cst_14 [2] : vector<4x16x8xf32> to vector<4x16xf32>
    %24 = vector.shape_cast %23 : vector<4x16xf32> to vector<4x16x1xf32>
    %cst_15 = arith.constant dense<0.000000e+00> : vector<4x16xf32>
    %25 = vector.multi_reduction <add>, %22, %cst_15 [2] : vector<4x16x8xf32> to vector<4x16xf32>
    %26 = vector.shape_cast %25 : vector<4x16xf32> to vector<4x16x1xf32>
    %27 = arith.addf %24, %26 : vector<4x16x1xf32>
    %28 = tpu.reciprocal %27 : vector<4x16x1xf32> -> vector<4x16x1xf32>
    %29 = vector.broadcast %28 : vector<4x16x1xf32> to vector<4x16x8xf32>
    %30 = arith.mulf %19, %29 : vector<4x16x8xf32>
    %31 = vector.broadcast %28 : vector<4x16x1xf32> to vector<4x16x8xf32>
    %32 = arith.mulf %22, %31 : vector<4x16x8xf32>
    %33 = arith.truncf %30 : vector<4x16x8xf32> to vector<4x16x8xbf16>
    %c0_16 = arith.constant 0 : index
    %c0_17 = arith.constant 0 : index
    %c0_18 = arith.constant 0 : index
    %c0_19 = arith.constant 0 : index
    %34 = vector.load %arg4[%c0_16, %c0_17, %c0_18, %c0_19] : memref<1x4x8x8xbf16, #tpu.memory_space<vmem>>, vector<1x4x8x8xbf16>
    %35 = vector.shape_cast %34 : vector<1x4x8x8xbf16> to vector<4x8x8xbf16>
    "tpu.trace_start"() <{level = 10 : i32, message = "htn,hnd->htd"}> : () -> ()
    %cst_20 = arith.constant dense<0.000000e+00> : vector<4x16x8xf32>
    %36 = tpu.matmul %33, %35, %cst_20 {dimension_numbers = #tpu.dot_dimension_numbers<[2], [1], [1], [2], [0, 0, 0, 1, 1, 2], [0], [0]>} : vector<4x16x8xbf16>, vector<4x8x8xbf16>, vector<4x16x8xf32> -> vector<4x16x8xf32>
    "tpu.trace_stop"() : () -> ()
    %37 = arith.truncf %32 : vector<4x16x8xf32> to vector<4x16x8xbf16>
    %c0_21 = arith.constant 0 : index
    %c0_22 = arith.constant 0 : index
    %c0_23 = arith.constant 0 : index
    %38 = vector.load %arg11[%c0_21, %c0_22, %c0_23] : memref<4x8x8xbf16, #tpu.memory_space<vmem>>, vector<4x8x8xbf16>
    "tpu.trace_start"() <{level = 10 : i32, message = "htm,hmd->htd"}> : () -> ()
    %cst_24 = arith.constant dense<0.000000e+00> : vector<4x16x8xf32>
    %39 = tpu.matmul %37, %38, %cst_24 {dimension_numbers = #tpu.dot_dimension_numbers<[2], [1], [1], [2], [0, 0, 0, 1, 1, 2], [0], [0]>} : vector<4x16x8xbf16>, vector<4x8x8xbf16>, vector<4x16x8xf32> -> vector<4x16x8xf32>
    "tpu.trace_stop"() : () -> ()
    %40 = arith.addf %36, %39 : vector<4x16x8xf32>
    %41 = vector.extract_strided_slice %40 {offsets = [0, 0, 0], sizes = [1, 16, 8], strides = [1, 1, 1]} : vector<4x16x8xf32> to vector<1x16x8xf32>
    %42 = vector.shape_cast %41 : vector<1x16x8xf32> to vector<16x8xf32>
    %43 = vector.extract_strided_slice %40 {offsets = [1, 0, 0], sizes = [1, 16, 8], strides = [1, 1, 1]} : vector<4x16x8xf32> to vector<1x16x8xf32>
    %44 = vector.shape_cast %43 : vector<1x16x8xf32> to vector<16x8xf32>
    %45 = vector.extract_strided_slice %40 {offsets = [2, 0, 0], sizes = [1, 16, 8], strides = [1, 1, 1]} : vector<4x16x8xf32> to vector<1x16x8xf32>
    %46 = vector.shape_cast %45 : vector<1x16x8xf32> to vector<16x8xf32>
    %47 = vector.extract_strided_slice %40 {offsets = [3, 0, 0], sizes = [1, 16, 8], strides = [1, 1, 1]} : vector<4x16x8xf32> to vector<1x16x8xf32>
    %48 = vector.shape_cast %47 : vector<1x16x8xf32> to vector<16x8xf32>
    %49 = tpu.concatenate %42, %44, %46, %48 in 1 : vector<16x8xf32>, vector<16x8xf32>, vector<16x8xf32>, vector<16x8xf32> -> vector<16x32xf32>
    %50 = arith.truncf %49 : vector<16x32xf32> to vector<16x32xbf16>
    %c0_25 = arith.constant 0 : index
    %c0_26 = arith.constant 0 : index
    %c0_27 = arith.constant 0 : index
    %51 = vector.load %arg8[%c0_25, %c0_26, %c0_27] : memref<1x16x32xbf16, #tpu.memory_space<vmem>>, vector<1x16x32xbf16>
    %52 = vector.shape_cast %51 : vector<1x16x32xbf16> to vector<16x32xbf16>
    %53 = vector.shape_cast %50 : vector<16x32xbf16> to vector<1x16x32xbf16>
    tpu.vector_store %arg8[%c0_25, %c0_26, %c0_27], %53 {strides = array<i32>} : memref<1x16x32xbf16, #tpu.memory_space<vmem>>, vector<1x16x32xbf16>,
    %cst_28 = arith.constant dense<0.000000e+00> : vector<16x8xf32>
    %54 = vector.multi_reduction <add>, %30, %cst_28 [0] : vector<4x16x8xf32> to vector<16x8xf32>
    %cst_29 = arith.constant dense<0.000000e+00> : vector<16x8xf32>
    %55 = vector.multi_reduction <add>, %32, %cst_29 [0] : vector<4x16x8xf32> to vector<16x8xf32>
    %56 = tpu.concatenate %54, %55 in 1 : vector<16x8xf32>, vector<16x8xf32> -> vector<16x16xf32>
    %cst_30 = arith.constant 2.500000e-01 : f32
    %57 = vector.broadcast %cst_30 : f32 to vector<16x16xf32>
    %58 = arith.mulf %56, %57 : vector<16x16xf32>
    %c0_31 = arith.constant 0 : index
    %c0_32 = arith.constant 0 : index
    %c0_33 = arith.constant 0 : index
    %59 = vector.load %arg9[%c0_31, %c0_32, %c0_33] : memref<1x16x16xf32, #tpu.memory_space<vmem>>, vector<1x16x16xf32>
    %60 = vector.shape_cast %59 : vector<1x16x16xf32> to vector<16x16xf32>
    %61 = vector.shape_cast %58 : vector<16x16xf32> to vector<1x16x16xf32>
    tpu.vector_store %arg9[%c0_31, %c0_32, %c0_33], %61 {strides = array<i32>} : memref<1x16x16xf32, #tpu.memory_space<vmem>>, vector<1x16x16xf32>,
    return
  }
  func.func @transform_0(%arg0: i32, %arg1: i32) -> (i32, i32, i32, i32) {
    %c0_i32 = arith.constant 0 : i32
    %c0_i32_0 = arith.constant 0 : i32
    %c0_i32_1 = arith.constant 0 : i32
    return %arg0, %c0_i32, %arg1, %c0_i32_0 : i32, i32, i32, i32
  }
  func.func @transform_1(%arg0: i32, %arg1: i32) -> (i32, i32, i32, i32) {
    %c0_i32 = arith.constant 0 : i32
    %c0_i32_0 = arith.constant 0 : i32
    %c0_i32_1 = arith.constant 0 : i32
    %c0_i32_2 = arith.constant 0 : i32
    return %arg0, %c0_i32, %c0_i32_0, %c0_i32_1 : i32, i32, i32, i32
  }
  func.func @transform_2(%arg0: i32, %arg1: i32) -> (i32, i32, i32, i32) {
    %c0_i32 = arith.constant 0 : i32
    %c0_i32_0 = arith.constant 0 : i32
    %c0_i32_1 = arith.constant 0 : i32
    %c0_i32_2 = arith.constant 0 : i32
    return %arg0, %c0_i32, %c0_i32_0, %c0_i32_1 : i32, i32, i32, i32
  }
  func.func @transform_3(%arg0: i32, %arg1: i32) -> (i32, i32, i32, i32) {
    %c0_i32 = arith.constant 0 : i32
    %c0_i32_0 = arith.constant 0 : i32
    %c0_i32_1 = arith.constant 0 : i32
    %c0_i32_2 = arith.constant 0 : i32
    return %arg0, %c0_i32, %c0_i32_0, %c0_i32_1 : i32, i32, i32, i32
  }
  func.func @transform_4(%arg0: i32, %arg1: i32) -> (i32, i32, i32) {
    %c0_i32 = arith.constant 0 : i32
    %c0_i32_0 = arith.constant 0 : i32
    %c0_i32_1 = arith.constant 0 : i32
    return %arg0, %c0_i32, %c0_i32_0 : i32, i32, i32
  }
  func.func @transform_5(%arg0: i32, %arg1: i32) -> (i32, i32, i32) {
    %c0_i32 = arith.constant 0 : i32
    %c0_i32_0 = arith.constant 0 : i32
    %c0_i32_1 = arith.constant 0 : i32
    return %arg0, %c0_i32, %c0_i32_0 : i32, i32, i32
  }
  func.func @transform_6(%arg0: i32, %arg1: i32) -> (i32, i32, i32) {
    %c0_i32 = arith.constant 0 : i32
    %c0_i32_0 = arith.constant 0 : i32
    return %arg0, %arg1, %c0_i32 : i32, i32, i32
  }
  func.func @transform_7(%arg0: i32, %arg1: i32) -> (i32, i32, i32) {
    %c0_i32 = arith.constant 0 : i32
    %c0_i32_0 = arith.constant 0 : i32
    return %arg0, %arg1, %c0_i32 : i32, i32, i32
  }
}

</mosaic_0001>

<llo_original>
// kernel: tpu_custom_call.1
$region0: #{tpu_custom_call.1}
  #allocation0 [shape = 'u32[]', space=smem, size = 0x4, offset = 0x4, fixed_abs, tag = 'smem constant byte address 0x4 - core index']
  #allocation1 [shape = 'u32[72,128]{1,0:T(1,128)}', space=vmem, size = 0x9000, scoped, tag = 'internal scratch']
  #allocation2 [shape = 'bf16[4,8,16]{2,1,0:T(8,128)(2,1)}', space=vmem, size = 0x2000, scoped, tag = 'scratch operand']
  #allocation3 [shape = 'bf16[4,8,8]{2,1,0:T(8,128)(2,1)}', space=vmem, size = 0x2000, scoped, tag = 'scratch operand']
  %s0 = inlined_call_operand.vmem [shape: bf16[2,4,16,8], index: 0, kind: input, shape index: {}]
  %s1 = inlined_call_operand.vmem [shape: bf16[2,4,8,16], index: 1, kind: input, shape index: {}]
  %s2 = inlined_call_operand.vmem [shape: bf16[2,4,8,8], index: 2, kind: input, shape index: {}]
  %s3 = inlined_call_operand.vmem [shape: bf16[2,4,8,8], index: 3, kind: input, shape index: {}]
  %s4 = inlined_call_operand.vmem [shape: f32[2,4,8], index: 4, kind: input, shape index: {}]
  %s5 = inlined_call_operand.vmem [shape: s32[2,8,2], index: 5, kind: input, shape index: {}]
  %s6 = inlined_call_operand.hbm [shape: bf16[2,16,32], index: 6, kind: output, shape index: {0}]
  %s7 = inlined_call_operand.hbm [shape: f32[2,16,16], index: 7, kind: output, shape index: {1}]
  %8 = xla_tuple %s6, %s7
  %s9 = sld [smem:[#allocation0]]
  $region69: #{tpu_custom_call.1} parent=0
    _
  %s11 = ssub.s32 1, %s9
  %s12 = scalar_select 0, %s11, %s9
  $region1: #{tpu_custom_call.1} parent=0
    #allocation4 [shape = 'u8[8192]{0}', space=vmem, size = 0x2000, scoped, tag = 'output window, operand 0']
    #allocation5 [shape = 's32[2]{0}', space=sflag, size = 0x8, scoped, tag = 'scoped memory for tpu_custom_call.1']
    #allocation6 [shape = 'u8[16384]{0}', space=vmem, size = 0x4000, scoped, tag = 'output window, operand 1']
    #allocation7 [shape = 's32[2]{0}', space=sflag, size = 0x8, scoped, tag = 'scoped memory for tpu_custom_call.1']
    %13 = vsyncpa [#allocation5], 0
    %s14 = scalar_lea.sflag [#allocation5], 1
    %15 = vsyncpa %s14, 0
    %16 = vsyncpa [#allocation7], 0
    %s17 = scalar_lea.sflag [#allocation7], 1
    %18 = vsyncpa %s17, 0
    loop: start=0, step=1, limit=4
    $region2: #{tpu_custom_call.1} parent=1 // loop_pre_header
      _
    $region3: #{tpu_custom_call.1} parent=1 // loop_header
      %s20 = sphi 0, %s24
      %p21 = scmp.ge.s32.totalorder %s20, 4
      %s27 = sphi 0, %s39
      %s28 = sphi 0, %s35
      %s29 = sphi 0, %s27
      %s30 = sphi 0, %s28
      %s31 = sphi 0, %s29
      %s32 = sphi 0, %s30
      %s44 = sphi 0, %s46
      %s47 = sphi 0, %s44
      %s48 = sphi 0, %s47
      %s64 = sphi 0, %s48
      %s70 = sphi 0, %s72
      %s73 = sphi 0, %s70
      %s74 = sphi 0, %s73
      %s90 = sphi 0, %s74
      %s96 = sphi 0, %s98
      %s99 = sphi 0, %s96
      %s100 = sphi 0, %s99
      %s116 = sphi 0, %s100
      %s122 = sphi 0, %s124
      %s125 = sphi 0, %s122
      %s126 = sphi 0, %s125
      %s142 = sphi 0, %s126
      %s148 = sphi 0, %s150
      %s151 = sphi 0, %s148
      %s152 = sphi 0, %s151
      %s168 = sphi 0, %s152
      %s174 = sphi 0, %s176
      %s177 = sphi 0, %s174
      %s178 = sphi 0, %s177
      %s194 = sphi 0, %s178
      %s202 = sphi 0, %s204
      %s205 = sphi 0, %s202
      %s206 = sphi 0, %s205
      %s222 = sphi 0, %s206
      %s230 = sphi 0, %s232
      %s233 = sphi 0, %s230
      %s234 = sphi 0, %s233
      %s250 = sphi 0, %s234
    $region4: #{tpu_custom_call.1} parent=1 // loop_header_branch
      %23 = sbr.rel (%p21) target = $region8
    $region5: #{tpu_custom_call.1} parent=1 // loop_body
      %s25 = ssub.s32 %s20, 1
      %s26 = ssub.s32 %s20, 2
      %s33 = sadd.s32 1, %s28
      %p34 = scmp.ge.s32.totalorder %s33, 1
      %s35 = scalar_select %p34, 0, %s33
      %s36 = sadd.s32 1, %s27
      %s37 = scalar_select %p34, %s36, %s27
      %p38 = scmp.ge.s32.totalorder %s37, 2
      %s39 = scalar_select %p38, 0, %s37
      %s40 = ssub.s32 %s27, %s39
      %s41 = ssub.s32 %s28, %s35
      %s42 = sor.u32 %s40, %s41
      %p43 = scmp.eq.s32.totalorder %s42, 0
      %s45 = sadd.s32 %s44, 1
      %s46 = scalar_select %p43, %s44, %s45
      %p49 = pneg %p43
      %p50 = scmp.eq.s32.totalorder %s20, 1
      %p51 = por %p49, %p50
      %p52 = scmp.ne.s32.totalorder %s44, %s47
      %p53 = scmp.eq.s32.totalorder %s20, 0
      %p54 = por %p52, %p53
      %p55 = scmp.ne.s32.totalorder %s44, %s47
      %p56 = scmp.eq.s32.totalorder %s25, 1
      %p57 = por %p55, %p56
      %p58 = scmp.ne.s32.totalorder %s47, %s48
      %p59 = scmp.eq.s32.totalorder %s25, 0
      %p60 = por %p58, %p59
      %p61 = scmp.ne.s32.totalorder %s47, %s48
      %p62 = scmp.eq.s32.totalorder %s26, 1
      %p63 = por %p61, %p62
      %p65 = scmp.ne.s32.totalorder %s48, %s64
      %p66 = scmp.eq.s32.totalorder %s26, 0
      %p67 = por %p65, %p66
      %s68 = ssub.s32 %s27, %s39
      %p69 = scmp.eq.s32.totalorder %s68, 0
      %s71 = sadd.s32 %s70, 1
      %s72 = scalar_select %p69, %s70, %s71
      %p75 = pneg %p69
      %p76 = scmp.eq.s32.totalorder %s20, 1
      %p77 = por %p75, %p76
      %p78 = scmp.ne.s32.totalorder %s70, %s73
      %p79 = scmp.eq.s32.totalorder %s20, 0
      %p80 = por %p78, %p79
      %p81 = scmp.ne.s32.totalorder %s70, %s73
      %p82 = scmp.eq.s32.totalorder %s25, 1
      %p83 = por %p81, %p82
      %p84 = scmp.ne.s32.totalorder %s73, %s74
      %p85 = scmp.eq.s32.totalorder %s25, 0
      %p86 = por %p84, %p85
      %p87 = scmp.ne.s32.totalorder %s73, %s74
      %p88 = scmp.eq.s32.totalorder %s26, 1
      %p89 = por %p87, %p88
      %p91 = scmp.ne.s32.totalorder %s74, %s90
      %p92 = scmp.eq.s32.totalorder %s26, 0
      %p93 = por %p91, %p92
      %s94 = ssub.s32 %s27, %s39
      %p95 = scmp.eq.s32.totalorder %s94, 0
      %s97 = sadd.s32 %s96, 1
      %s98 = scalar_select %p95, %s96, %s97
      %p101 = pneg %p95
      %p102 = scmp.eq.s32.totalorder %s20, 1
      %p103 = por %p101, %p102
      %p104 = scmp.ne.s32.totalorder %s96, %s99
      %p105 = scmp.eq.s32.totalorder %s20, 0
      %p106 = por %p104, %p105
      %p107 = scmp.ne.s32.totalorder %s96, %s99
      %p108 = scmp.eq.s32.totalorder %s25, 1
      %p109 = por %p107, %p108
      %p110 = scmp.ne.s32.totalorder %s99, %s100
      %p111 = scmp.eq.s32.totalorder %s25, 0
      %p112 = por %p110, %p111
      %p113 = scmp.ne.s32.totalorder %s99, %s100
      %p114 = scmp.eq.s32.totalorder %s26, 1
      %p115 = por %p113, %p114
      %p117 = scmp.ne.s32.totalorder %s100, %s116
      %p118 = scmp.eq.s32.totalorder %s26, 0
      %p119 = por %p117, %p118
      %s120 = ssub.s32 %s27, %s39
      %p121 = scmp.eq.s32.totalorder %s120, 0
      %s123 = sadd.s32 %s122, 1
      %s124 = scalar_select %p121, %s122, %s123
      %p127 = pneg %p121
      %p128 = scmp.eq.s32.totalorder %s20, 1
      %p129 = por %p127, %p128
      %p130 = scmp.ne.s32.totalorder %s122, %s125
      %p131 = scmp.eq.s32.totalorder %s20, 0
      %p132 = por %p130, %p131
      %p133 = scmp.ne.s32.totalorder %s122, %s125
      %p134 = scmp.eq.s32.totalorder %s25, 1
      %p135 = por %p133, %p134
      %p136 = scmp.ne.s32.totalorder %s125, %s126
      %p137 = scmp.eq.s32.totalorder %s25, 0
      %p138 = por %p136, %p137
      %p139 = scmp.ne.s32.totalorder %s125, %s126
      %p140 = scmp.eq.s32.totalorder %s26, 1
      %p141 = por %p139, %p140
      %p143 = scmp.ne.s32.totalorder %s126, %s142
      %p144 = scmp.eq.s32.totalorder %s26, 0
      %p145 = por %p143, %p144
      %s146 = ssub.s32 %s27, %s39
      %p147 = scmp.eq.s32.totalorder %s146, 0
      %s149 = sadd.s32 %s148, 1
      %s150 = scalar_select %p147, %s148, %s149
      %p153 = pneg %p147
      %p154 = scmp.eq.s32.totalorder %s20, 1
      %p155 = por %p153, %p154
      %p156 = scmp.ne.s32.totalorder %s148, %s151
      %p157 = scmp.eq.s32.totalorder %s20, 0
      %p158 = por %p156, %p157
      %p159 = scmp.ne.s32.totalorder %s148, %s151
      %p160 = scmp.eq.s32.totalorder %s25, 1
      %p161 = por %p159, %p160
      %p162 = scmp.ne.s32.totalorder %s151, %s152
      %p163 = scmp.eq.s32.totalorder %s25, 0
      %p164 = por %p162, %p163
      %p165 = scmp.ne.s32.totalorder %s151, %s152
      %p166 = scmp.eq.s32.totalorder %s26, 1
      %p167 = por %p165, %p166
      %p169 = scmp.ne.s32.totalorder %s152, %s168
      %p170 = scmp.eq.s32.totalorder %s26, 0
      %p171 = por %p169, %p170
      %s172 = ssub.s32 %s27, %s39
      %p173 = scmp.eq.s32.totalorder %s172, 0
      %s175 = sadd.s32 %s174, 1
      %s176 = scalar_select %p173, %s174, %s175
      %p179 = pneg %p173
      %p180 = scmp.eq.s32.totalorder %s20, 1
      %p181 = por %p179, %p180
      %p182 = scmp.ne.s32.totalorder %s174, %s177
      %p183 = scmp.eq.s32.totalorder %s20, 0
      %p184 = por %p182, %p183
      %p185 = scmp.ne.s32.totalorder %s174, %s177
      %p186 = scmp.eq.s32.totalorder %s25, 1
      %p187 = por %p185, %p186
      %p188 = scmp.ne.s32.totalorder %s177, %s178
      %p189 = scmp.eq.s32.totalorder %s25, 0
      %p190 = por %p188, %p189
      %p191 = scmp.ne.s32.totalorder %s177, %s178
      %p192 = scmp.eq.s32.totalorder %s26, 1
      %p193 = por %p191, %p192
      %p195 = scmp.ne.s32.totalorder %s178, %s194
      %p196 = scmp.eq.s32.totalorder %s26, 0
      %p197 = por %p195, %p196
      %s198 = ssub.s32 %s27, %s39
      %s199 = ssub.s32 %s28, %s35
      %s200 = sor.u32 %s198, %s199
      %p201 = scmp.eq.s32.totalorder %s200, 0
      %s203 = sadd.s32 %s202, 1
      %s204 = scalar_select %p201, %s202, %s203
      %p207 = pneg %p201
      %p208 = scmp.eq.s32.totalorder %s20, 1
      %p209 = por %p207, %p208
      %p210 = scmp.ne.s32.totalorder %s202, %s205
      %p211 = scmp.eq.s32.totalorder %s20, 0
      %p212 = por %p210, %p211
      %p213 = scmp.ne.s32.totalorder %s202, %s205
      %p214 = scmp.eq.s32.totalorder %s25, 1
      %p215 = por %p213, %p214
      %p216 = scmp.ne.s32.totalorder %s205, %s206
      %p217 = scmp.eq.s32.totalorder %s25, 0
      %p218 = por %p216, %p217
      %p219 = scmp.ne.s32.totalorder %s205, %s206
      %p220 = scmp.eq.s32.totalorder %s26, 1
      %p221 = por %p219, %p220
      %p223 = scmp.ne.s32.totalorder %s206, %s222
      %p224 = scmp.eq.s32.totalorder %s26, 0
      %p225 = por %p223, %p224
      %s226 = ssub.s32 %s27, %s39
      %s227 = ssub.s32 %s28, %s35
      %s228 = sor.u32 %s226, %s227
      %p229 = scmp.eq.s32.totalorder %s228, 0
      %s231 = sadd.s32 %s230, 1
      %s232 = scalar_select %p229, %s230, %s231
      %p235 = pneg %p229
      %p236 = scmp.eq.s32.totalorder %s20, 1
      %p237 = por %p235, %p236
      %p238 = scmp.ne.s32.totalorder %s230, %s233
      %p239 = scmp.eq.s32.totalorder %s20, 0
      %p240 = por %p238, %p239
      %p241 = scmp.ne.s32.totalorder %s230, %s233
      %p242 = scmp.eq.s32.totalorder %s25, 1
      %p243 = por %p241, %p242
      %p244 = scmp.ne.s32.totalorder %s233, %s234
      %p245 = scmp.eq.s32.totalorder %s25, 0
      %p246 = por %p244, %p245
      %p247 = scmp.ne.s32.totalorder %s233, %s234
      %p248 = scmp.eq.s32.totalorder %s26, 1
      %p249 = por %p247, %p248
      %p251 = scmp.ne.s32.totalorder %s234, %s250
      %p252 = scmp.eq.s32.totalorder %s26, 0
      %p253 = por %p251, %p252
      %p254 = scmp.le.s32.totalorder 1, %s20
      %p255 = scmp.lt.s32.totalorder %s20, 3
      %p256 = pnand %p254, %p255
      %p257 = pneg %p256
      // Predicated region
      $region9: #{tpu_custom_call.1} parent=5 // pred_check
        _
      $region10: #{tpu_custom_call.1} parent=5 // pred_check_branch
        %259 = sbr.rel (%p256) target = $region12
      $region11: #{tpu_custom_call.1} parent=5 // pred_region
        %s260 = ssub.s32 %s20, 1
      $region12: #{tpu_custom_call.1} parent=5 // pred_fallthru
        _
      %p261 = scmp.lt.s32.totalorder %s20, 2
      // Predicated region
      $region13: #{tpu_custom_call.1} parent=5 // pred_check
        %p262 = pneg %p261
      $region14: #{tpu_custom_call.1} parent=5 // pred_check_branch
        %264 = sbr.rel (%p262) target = $region16
      $region15: #{tpu_custom_call.1} parent=5 // pred_region
        // Predicated region
        $region17: #{tpu_custom_call.1} parent=15 // pred_check
          %p265 = pneg %p54
        $region18: #{tpu_custom_call.1} parent=15 // pred_check_branch
          %267 = sbr.rel (%p265) target = $region20
        $region19: #{tpu_custom_call.1} parent=15 // pred_region
          %s268 = smul.u32 2, %s28
          %p269 = scmp.lt.s32.totalorder %s27, 1
          %s270 = scalar_select %p269, %s27, 1
          %p271 = scmp.lt.s32.totalorder %s268, 1
          %s272 = scalar_select %p271, %s268, 1
          %s273 = smul.addr %s270, 8
          %s274 = sadd.s32 %s272, %s273
          %s275 = smul.addr %s274, 4
          %s276 = scalar_lea.vmem %s0, %s275
          %s277 = smul.u32 2, %s28
        $region20: #{tpu_custom_call.1} parent=15 // pred_fallthru
          _
        // Predicated region
        $region21: #{tpu_custom_call.1} parent=15 // pred_check
          %p278 = pneg %p80
        $region22: #{tpu_custom_call.1} parent=15 // pred_check_branch
          %280 = sbr.rel (%p278) target = $region24
        $region23: #{tpu_custom_call.1} parent=15 // pred_region
          %p281 = scmp.lt.s32.totalorder %s27, 1
          %s282 = scalar_select %p281, %s27, 1
          %s283 = smul.addr %s282, 4
          %s284 = smul.addr %s283, 4
          %s285 = scalar_lea.vmem %s1, %s284
        $region24: #{tpu_custom_call.1} parent=15 // pred_fallthru
          _
        // Predicated region
        $region25: #{tpu_custom_call.1} parent=15 // pred_check
          %p286 = pneg %p106
        $region26: #{tpu_custom_call.1} parent=15 // pred_check_branch
          %288 = sbr.rel (%p286) target = $region28
        $region27: #{tpu_custom_call.1} parent=15 // pred_region
          %p289 = scmp.lt.s32.totalorder %s27, 1
          %s290 = scalar_select %p289, %s27, 1
          %s291 = smul.addr %s290, 4
          %s292 = smul.addr %s291, 4
          %s293 = scalar_lea.vmem %s2, %s292
        $region28: #{tpu_custom_call.1} parent=15 // pred_fallthru
          _
        // Predicated region
        $region29: #{tpu_custom_call.1} parent=15 // pred_check
          %p294 = pneg %p132
        $region30: #{tpu_custom_call.1} parent=15 // pred_check_branch
          %296 = sbr.rel (%p294) target = $region32
        $region31: #{tpu_custom_call.1} parent=15 // pred_region
          %p297 = scmp.lt.s32.totalorder %s27, 1
          %s298 = scalar_select %p297, %s27, 1
          %s299 = smul.addr %s298, 4
          %s300 = smul.addr %s299, 4
          %s301 = scalar_lea.vmem %s3, %s300
        $region32: #{tpu_custom_call.1} parent=15 // pred_fallthru
          _
        // Predicated region
        $region33: #{tpu_custom_call.1} parent=15 // pred_check
          %p302 = pneg %p158
        $region34: #{tpu_custom_call.1} parent=15 // pred_check_branch
          %304 = sbr.rel (%p302) target = $region36
        $region35: #{tpu_custom_call.1} parent=15 // pred_region
          %p305 = scmp.lt.s32.totalorder %s27, 1
          %s306 = scalar_select %p305, %s27, 1
          %s307 = smul.addr %s306, 4
          %s308 = scalar_lea.vmem %s4, %s307
        $region36: #{tpu_custom_call.1} parent=15 // pred_fallthru
          _
        // Predicated region
        $region37: #{tpu_custom_call.1} parent=15 // pred_check
          %p309 = pneg %p184
        $region38: #{tpu_custom_call.1} parent=15 // pred_check_branch
          %311 = sbr.rel (%p309) target = $region40
        $region39: #{tpu_custom_call.1} parent=15 // pred_region
          %p312 = scmp.lt.s32.totalorder %s27, 1
          %s313 = scalar_select %p312, %s27, 1
          %s314 = smul.addr %s313, 8
          %s315 = scalar_lea.vmem %s5, %s314
        $region40: #{tpu_custom_call.1} parent=15 // pred_fallthru
          _
      $region16: #{tpu_custom_call.1} parent=5 // pred_fallthru
        _
      %p316 = scmp.le.s32.totalorder 1, %s20
      %p317 = scmp.lt.s32.totalorder %s20, 3
      %p318 = pnand %p316, %p317
      %p319 = pneg %p318
      // Predicated region
      $region41: #{tpu_custom_call.1} parent=5 // pred_check
        _
      $region42: #{tpu_custom_call.1} parent=5 // pred_check_branch
        %321 = sbr.rel (%p318) target = $region44
      $region43: #{tpu_custom_call.1} parent=5 // pred_region
        %s322 = ssub.s32 %s20, 1
        %s323 = smul.u32 2, %s30
        %p324 = scmp.lt.s32.totalorder %s29, 1
        %s325 = scalar_select %p324, %s29, 1
        %p326 = scmp.lt.s32.totalorder %s323, 1
        %s327 = scalar_select %p326, %s323, 1
        %s328 = smul.addr %s325, 8
        %s329 = sadd.s32 %s327, %s328
        %s330 = smul.addr %s329, 4
        %s331 = scalar_lea.vmem %s0, %s330
        %p332 = pneg %p60
        %p333 = pneg %p57
        %p334 = scmp.lt.s32.totalorder %s29, 1
        %s335 = scalar_select %p334, %s29, 1
        %s336 = smul.addr %s335, 4
        %s337 = smul.addr %s336, 4
        %s338 = scalar_lea.vmem %s1, %s337
        %p339 = pneg %p86
        %p340 = pneg %p83
        %p341 = scmp.lt.s32.totalorder %s29, 1
        %s342 = scalar_select %p341, %s29, 1
        %s343 = smul.addr %s342, 4
        %s344 = smul.addr %s343, 4
        %s345 = scalar_lea.vmem %s2, %s344
        %p346 = pneg %p112
        %p347 = pneg %p109
        %p348 = scmp.lt.s32.totalorder %s29, 1
        %s349 = scalar_select %p348, %s29, 1
        %s350 = smul.addr %s349, 4
        %s351 = smul.addr %s350, 4
        %s352 = scalar_lea.vmem %s3, %s351
        %p353 = pneg %p138
        %p354 = pneg %p135
        %p355 = scmp.lt.s32.totalorder %s29, 1
        %s356 = scalar_select %p355, %s29, 1
        %s357 = smul.addr %s356, 4
        %s358 = scalar_lea.vmem %s4, %s357
        %p359 = pneg %p164
        %p360 = pneg %p161
        %p361 = scmp.lt.s32.totalorder %s29, 1
        %s362 = scalar_select %p361, %s29, 1
        %s363 = smul.addr %s362, 8
        %s364 = scalar_lea.vmem %s5, %s363
        %p365 = pneg %p190
        %p366 = pneg %p187
        %p367 = pneg %p218
        %p368 = pneg %p215
        %s369 = sand.u32 %s205, 1
        %s370 = scalar_lea.sflag [#allocation5], %s369
        %s371 = sand.u32 %s205, 1
        %s372 = smul.addr %s371, 8
        %s373 = scalar_lea.vmem [#allocation4], %s372
        %p374 = pneg %p246
        %p375 = pneg %p243
        %s376 = sand.u32 %s233, 1
        %s377 = scalar_lea.sflag [#allocation7], %s376
        %s378 = sand.u32 %s233, 1
        %s379 = smul.addr %s378, 16
        %s380 = scalar_lea.vmem [#allocation6], %s379
        %s381 = smul.u32 2, %s30
        %p382 = scmp.lt.s32.totalorder %s29, 1
        %s383 = scalar_select %p382, %s29, 1
        %p384 = scmp.lt.s32.totalorder %s381, 1
        %s385 = scalar_select %p384, %s381, 1
        %s386 = smul.addr %s383, 8
        %s387 = sadd.s32 %s385, %s386
        %s388 = smul.addr %s387, 4
        %s389 = scalar_lea.vmem %s0, %s388
        %s390 = smul.u32 2, %s30
        %p391 = scmp.lt.s32.totalorder %s29, 1
        %s392 = scalar_select %p391, %s29, 1
        %s393 = smul.addr %s392, 4
        %s394 = smul.addr %s393, 4
        %s395 = scalar_lea.vmem %s1, %s394
        %p396 = scmp.lt.s32.totalorder %s29, 1
        %s397 = scalar_select %p396, %s29, 1
        %s398 = smul.addr %s397, 4
        %s399 = smul.addr %s398, 4
        %s400 = scalar_lea.vmem %s2, %s399
        %p401 = scmp.lt.s32.totalorder %s29, 1
        %s402 = scalar_select %p401, %s29, 1
        %s403 = smul.addr %s402, 4
        %s404 = smul.addr %s403, 4
        %s405 = scalar_lea.vmem %s3, %s404
        %p406 = scmp.lt.s32.totalorder %s29, 1
        %s407 = scalar_select %p406, %s29, 1
        %s408 = smul.addr %s407, 4
        %s409 = scalar_lea.vmem %s4, %s408
        %p410 = scmp.lt.s32.totalorder %s29, 1
        %s411 = scalar_select %p410, %s29, 1
        %s412 = smul.addr %s411, 8
        %s413 = scalar_lea.vmem %s5, %s412
        %s414 = smul.u32 2, %s30
        %s415 = smul.u32 2, %s30
        %p417 = scmp.eq.s32.totalorder %s30, 0
        // Predicated region
        $region45: #{tpu_custom_call.1} parent=43 // pred_check
          %p418 = pneg %p417
        $region46: #{tpu_custom_call.1} parent=43 // pred_check_branch
          %420 = sbr.rel (%p418) target = $region48
        $region47: #{tpu_custom_call.1} parent=43 // pred_region
          %v421 = vld [vmem:[%s413] sm:$0xff]
          %v422 = vlaneseq
          %v423 = vand.u32 %v422, 127
          %424 = vset.pattern.permute.xlu0 0
          %425 = vperm.xlu0 %424, %v421
          %v426 = vpop.permute.xlu0 %425
          %vm427 = vcmp.ge.s32.totalorder %v423, %v426
          %428 = vset.pattern.permute.xlu0 1
          %429 = vperm.xlu0 %428, %v421
          %v430 = vpop.permute.xlu0 %429
          %vm431 = vcmp.gt.s32.totalorder %v423, %v430
          %vm432 = vmxor %vm427, %vm431
          %433 = vrot.lane.b32.xlu0 %v421, 127
          %v434 = vpop.permute.xlu0 %433
          %vm435 = vcmp.le.s32.totalorder %v421, %v434
          %v436 = vsel %vm435, 1, 0
          %437 = vset.pattern.permute.xlu0 0
          %438 = vperm.xlu0 %437, %v436
          %v439 = vpop.permute.xlu0 %438
          %vm440 = vcmp.eq.s32.totalorder %v439, 1
          %vm441 = vmand %vm432, %vm440
          %v442 = vsel %vm441, 1, 0
          %v443 = vcvt.s32.f32 %v442
          %v444 = vpack.c.bf16 %v443, %v443
          %v445 = vld [vmem:[%s409] sm:$0xf]
          %v447 = vrot.slane %v445, 1
          %v448 = vrot.slane %v445, 2
          %v449 = vrot.slane %v445, 3
          %v450 = vperm.slane %v445, 0
          %v451 = vperm.slane %v447, 0
          %v452 = vperm.slane %v448, 0
          %v453 = vperm.slane %v449, 0
          %v458 = vmul.f32 %v450, %v443
          %v459 = vmul.f32 %v451, %v443
          %v460 = vmul.f32 %v452, %v443
          %v461 = vmul.f32 %v453, %v443
          %v462 = vpack.c.bf16 %v458, %v458
          %v463 = vpack.c.bf16 %v459, %v459
          %v464 = vpack.c.bf16 %v460, %v460
          %v465 = vpack.c.bf16 %v461, %v461
          %v470 = vunpack.c.l.b16 %v462
          %v471 = vunpack.c.l.b16 %v463
          %v472 = vunpack.c.l.b16 %v464
          %v473 = vunpack.c.l.b16 %v465
          %v474 = vpack.c.b16 %v471, %v470
          %v475 = vpack.c.b16 %v473, %v472
          %vm476 = vcmask 64512
          %v478 = vsel %vm476, %v474, 0
          %v481 = vsel %vm476, %v475, 0
          %v484 = vsel %vm476, %v444, 0
          %486 = vmatpush.bf16.xpose.msra.mxu0 0
          %487 = vmatpush.bf16.xpose.msra.mxu0 0
          %488 = vmatpush.bf16.xpose.msra.mxu0 0
          %489 = vmatpush.bf16.xpose.msra.mxu0 0
          %490 = vmatpush.bf16.xpose.msra.mxu0 0
          %491 = vmatpush.bf16.xpose.msra.mxu0 0
          %492 = vmatpush.bf16.xpose.msra.mxu0 0
          %493 = vmatpush.bf16.xpose.msra.mxu0 %v484
          %494 = vmatmul.bf16.gmra.mxu0 %v478
          %v495 = vpop.f32.mrf.mxu0
          %v496 = vadd.f32 0.0, %v495
          %v497 = vpop.f32.mrf.mxu0
          %v498 = vadd.f32 0.0, %v497
          %499 = vmatmul.bf16.gmra.mxu0 %v481
          %v500 = vpop.f32.mrf.mxu0
          %v501 = vadd.f32 0.0, %v500
          %v502 = vpop.f32.mrf.mxu0
          %v503 = vadd.f32 0.0, %v502
          %504 = vdwg.mxu0
          %v505 = vlaneseq
          %v506 = vshrl.u32 %v505, 7
          %vm507 = vcmp.ge.s32.totalorder %v506, %v423
          %v508 = vsel %vm507, 1, 0
          %vm509 = vcmp.eq.s32.totalorder %v508, 1
          %v510 = vsel %vm509, %v496, 0.0
          %v511 = vsel %vm509, %v498, 0.0
          %v512 = vsel %vm509, %v501, 0.0
          %v513 = vsel %vm509, %v503, 0.0
          %v514 = vpack.c.bf16 %v510, %v510
          %v515 = vpack.c.bf16 %v511, %v511
          %v516 = vpack.c.bf16 %v512, %v512
          %v517 = vpack.c.bf16 %v513, %v513
          %v522 = vunpack.c.l.b16 %v514
          %v523 = vunpack.c.l.b16 %v515
          %v524 = vunpack.c.l.b16 %v516
          %v525 = vunpack.c.l.b16 %v517
          %v526 = vpack.c.b16 %v522, %v522
          %v527 = vpack.c.b16 %v523, %v523
          %v528 = vpack.c.b16 %v524, %v524
          %v529 = vpack.c.b16 %v525, %v525
          %530 = vrot.lane.b32.xlu0 %v526, 8
          %v531 = vpop.permute.xlu0 %530
          %532 = vrot.lane.b32.xlu0 %v527, 8
          %v533 = vpop.permute.xlu0 %532
          %534 = vrot.lane.b32.xlu0 %v528, 8
          %v535 = vpop.permute.xlu0 %534
          %536 = vrot.lane.b32.xlu0 %v529, 8
          %v537 = vpop.permute.xlu0 %536
          %v540 = vsel %vm476, %v462, %v531
          %v544 = vsel %vm476, %v463, %v533
          %v548 = vsel %vm476, %v464, %v535
          %v552 = vsel %vm476, %v465, %v537
          %vm554 = vcmask 125952
          %555 = vst.msk [vmem:[#allocation2] sm:$0xf] %vm554, %v540
          %556 = vst.msk [vmem:[#allocation2 + $0x4] sm:$0xf] %vm554, %v544
          %557 = vst.msk [vmem:[#allocation2 + $0x8] sm:$0xf] %vm554, %v548
          %558 = vst.msk [vmem:[#allocation2 + $0xc] sm:$0xf] %vm554, %v552
          %v559 = vld [vmem:[%s400] sm:$0xf]
          %v560 = vld [vmem:[%s400 + $0x4] sm:$0xf]
          %v561 = vld [vmem:[%s400 + $0x8] sm:$0xf]
          %v562 = vld [vmem:[%s400 + $0xc] sm:$0xf]
          %v563 = vld [vmem:[%s405] sm:$0xf]
          %v564 = vld [vmem:[%s405 + $0x4] sm:$0xf]
          %v565 = vld [vmem:[%s405 + $0x8] sm:$0xf]
          %v566 = vld [vmem:[%s405 + $0xc] sm:$0xf]
          %v568 = vsel %vm476, %v514, 0
          %vm570 = vcmask 1043456
          %v572 = vsel %vm570, %v563, 0
          %574 = vmatpush.bf16.msra.mxu0 0
          %575 = vmatpush.bf16.msra.mxu0 0
          %576 = vmatpush.bf16.msra.mxu0 0
          %577 = vmatpush.bf16.msra.mxu0 0
          %578 = vmatpush.bf16.msra.mxu0 0
          %579 = vmatpush.bf16.msra.mxu0 0
          %580 = vmatpush.bf16.msra.mxu0 0
          %581 = vmatpush.bf16.msra.mxu0 %v572
          %582 = vmatmul.bf16.gmra.mxu0 %v568
          %v583 = vpop.f32.mrf.mxu0
          %v584 = vadd.f32 0.0, %v583
          %v585 = vpop.f32.mrf.mxu0
          %586 = vdwg.mxu0
          %v588 = vsel %vm476, %v515, 0
          %v591 = vsel %vm570, %v564, 0
          %593 = vmatpush.bf16.msra.mxu0 0
          %594 = vmatpush.bf16.msra.mxu0 0
          %595 = vmatpush.bf16.msra.mxu0 0
          %596 = vmatpush.bf16.msra.mxu0 0
          %597 = vmatpush.bf16.msra.mxu0 0
          %598 = vmatpush.bf16.msra.mxu0 0
          %599 = vmatpush.bf16.msra.mxu0 0
          %600 = vmatpush.bf16.msra.mxu0 %v591
          %601 = vmatmul.bf16.gmra.mxu0 %v588
          %v602 = vpop.f32.mrf.mxu0
          %v603 = vadd.f32 0.0, %v602
          %v604 = vpop.f32.mrf.mxu0
          %605 = vdwg.mxu0
          %v607 = vsel %vm476, %v516, 0
          %v610 = vsel %vm570, %v565, 0
          %612 = vmatpush.bf16.msra.mxu0 0
          %613 = vmatpush.bf16.msra.mxu0 0
          %614 = vmatpush.bf16.msra.mxu0 0
          %615 = vmatpush.bf16.msra.mxu0 0
          %616 = vmatpush.bf16.msra.mxu0 0
          %617 = vmatpush.bf16.msra.mxu0 0
          %618 = vmatpush.bf16.msra.mxu0 0
          %619 = vmatpush.bf16.msra.mxu0 %v610
          %620 = vmatmul.bf16.gmra.mxu0 %v607
          %v621 = vpop.f32.mrf.mxu0
          %v622 = vadd.f32 0.0, %v621
          %v623 = vpop.f32.mrf.mxu0
          %624 = vdwg.mxu0
          %v626 = vsel %vm476, %v517, 0
          %v629 = vsel %vm570, %v566, 0
          %631 = vmatpush.bf16.msra.mxu0 0
          %632 = vmatpush.bf16.msra.mxu0 0
          %633 = vmatpush.bf16.msra.mxu0 0
          %634 = vmatpush.bf16.msra.mxu0 0
          %635 = vmatpush.bf16.msra.mxu0 0
          %636 = vmatpush.bf16.msra.mxu0 0
          %637 = vmatpush.bf16.msra.mxu0 0
          %638 = vmatpush.bf16.msra.mxu0 %v629
          %639 = vmatmul.bf16.gmra.mxu0 %v626
          %v640 = vpop.f32.mrf.mxu0
          %v641 = vadd.f32 0.0, %v640
          %v642 = vpop.f32.mrf.mxu0
          %643 = vdwg.mxu0
          %v644 = vsel %vm476, %v462, 0
          %v647 = vsel %vm570, %v559, 0
          %649 = vmatpush.bf16.msra.mxu0 0
          %650 = vmatpush.bf16.msra.mxu0 0
          %651 = vmatpush.bf16.msra.mxu0 0
          %652 = vmatpush.bf16.msra.mxu0 0
          %653 = vmatpush.bf16.msra.mxu0 0
          %654 = vmatpush.bf16.msra.mxu0 0
          %655 = vmatpush.bf16.msra.mxu0 0
          %656 = vmatpush.bf16.msra.mxu0 %v647
          %657 = vmatmul.bf16.gmra.mxu0 %v644
          %v658 = vpop.f32.mrf.mxu0
          %v659 = vadd.f32 %v584, %v658
          %v660 = vpop.f32.mrf.mxu0
          %661 = vdwg.mxu0
          %v662 = vsel %vm476, %v463, 0
          %v665 = vsel %vm570, %v560, 0
          %667 = vmatpush.bf16.msra.mxu0 0
          %668 = vmatpush.bf16.msra.mxu0 0
          %669 = vmatpush.bf16.msra.mxu0 0
          %670 = vmatpush.bf16.msra.mxu0 0
          %671 = vmatpush.bf16.msra.mxu0 0
          %672 = vmatpush.bf16.msra.mxu0 0
          %673 = vmatpush.bf16.msra.mxu0 0
          %674 = vmatpush.bf16.msra.mxu0 %v665
          %675 = vmatmul.bf16.gmra.mxu0 %v662
          %v676 = vpop.f32.mrf.mxu0
          %v677 = vadd.f32 %v603, %v676
          %v678 = vpop.f32.mrf.mxu0
          %679 = vdwg.mxu0
          %v680 = vsel %vm476, %v464, 0
          %v683 = vsel %vm570, %v561, 0
          %685 = vmatpush.bf16.msra.mxu0 0
          %686 = vmatpush.bf16.msra.mxu0 0
          %687 = vmatpush.bf16.msra.mxu0 0
          %688 = vmatpush.bf16.msra.mxu0 0
          %689 = vmatpush.bf16.msra.mxu0 0
          %690 = vmatpush.bf16.msra.mxu0 0
          %691 = vmatpush.bf16.msra.mxu0 0
          %692 = vmatpush.bf16.msra.mxu0 %v683
          %693 = vmatmul.bf16.gmra.mxu0 %v680
          %v694 = vpop.f32.mrf.mxu0
          %v695 = vadd.f32 %v622, %v694
          %v696 = vpop.f32.mrf.mxu0
          %697 = vdwg.mxu0
          %v698 = vsel %vm476, %v465, 0
          %v701 = vsel %vm570, %v562, 0
          %703 = vmatpush.bf16.msra.mxu0 0
          %704 = vmatpush.bf16.msra.mxu0 0
          %705 = vmatpush.bf16.msra.mxu0 0
          %706 = vmatpush.bf16.msra.mxu0 0
          %707 = vmatpush.bf16.msra.mxu0 0
          %708 = vmatpush.bf16.msra.mxu0 0
          %709 = vmatpush.bf16.msra.mxu0 0
          %710 = vmatpush.bf16.msra.mxu0 %v701
          %711 = vmatmul.bf16.gmra.mxu0 %v698
          %v712 = vpop.f32.mrf.mxu0
          %v713 = vadd.f32 %v641, %v712
          %v714 = vpop.f32.mrf.mxu0
          %715 = vdwg.mxu0
          %v716 = vpack.c.bf16 %v659, %v659
          %v717 = vpack.c.bf16 %v677, %v677
          %v718 = vpack.c.bf16 %v695, %v695
          %v719 = vpack.c.bf16 %v713, %v713
          %vm720 = vcmask 60416
          %721 = vst.msk [vmem:[#allocation3] sm:$0xf] %vm720, %v716
          %722 = vst.msk [vmem:[#allocation3 + $0x4] sm:$0xf] %vm720, %v717
          %723 = vst.msk [vmem:[#allocation3 + $0x8] sm:$0xf] %vm720, %v718
          %724 = vst.msk [vmem:[#allocation3 + $0xc] sm:$0xf] %vm720, %v719
        $region48: #{tpu_custom_call.1} parent=43 // pred_fallthru
          _
        %v725 = vld [vmem:[%s389] sm:$0xf]
        %v726 = vld [vmem:[%s389 + $0x4] sm:$0xf]
        %v727 = vld [vmem:[%s389 + $0x8] sm:$0xf]
        %v728 = vld [vmem:[%s389 + $0xc] sm:$0xf]
        %v729 = vld [vmem:[%s389 + $0x10] sm:$0xf]
        %v730 = vld [vmem:[%s389 + $0x14] sm:$0xf]
        %v731 = vld [vmem:[%s389 + $0x18] sm:$0xf]
        %v732 = vld [vmem:[%s389 + $0x1c] sm:$0xf]
        %v733 = vld [vmem:[%s395] sm:$0xf]
        %v734 = vld [vmem:[%s395 + $0x4] sm:$0xf]
        %v735 = vld [vmem:[%s395 + $0x8] sm:$0xf]
        %v736 = vld [vmem:[%s395 + $0xc] sm:$0xf]
        %v739 = vunpack.c.l.b16 %v725
        %v740 = vunpack.c.l.b16 %v726
        %v741 = vpack.c.b16 %v740, %v739
        %vm742 = vcmask 64512
        %v744 = vsel %vm742, %v741, 0
        %vm746 = vcmask 1043456
        %v748 = vsel %vm746, %v733, 0
        %750 = vmatpush.bf16.msra.mxu0 0
        %751 = vmatpush.bf16.msra.mxu0 0
        %752 = vmatpush.bf16.msra.mxu0 0
        %753 = vmatpush.bf16.msra.mxu0 0
        %754 = vmatpush.bf16.msra.mxu0 0
        %755 = vmatpush.bf16.msra.mxu0 0
        %756 = vmatpush.bf16.msra.mxu0 0
        %757 = vmatpush.bf16.msra.mxu0 %v748
        %758 = vmatmul.bf16.gmra.mxu0 %v744
        %v759 = vpop.f32.mrf.mxu0
        %v760 = vadd.f32 0.0, %v759
        %v761 = vpop.f32.mrf.mxu0
        %v762 = vadd.f32 0.0, %v761
        %763 = vdwg.mxu0
        %v766 = vunpack.c.l.b16 %v727
        %v767 = vunpack.c.l.b16 %v728
        %v768 = vpack.c.b16 %v767, %v766
        %v770 = vsel %vm742, %v768, 0
        %v773 = vsel %vm746, %v734, 0
        %775 = vmatpush.bf16.msra.mxu0 0
        %776 = vmatpush.bf16.msra.mxu0 0
        %777 = vmatpush.bf16.msra.mxu0 0
        %778 = vmatpush.bf16.msra.mxu0 0
        %779 = vmatpush.bf16.msra.mxu0 0
        %780 = vmatpush.bf16.msra.mxu0 0
        %781 = vmatpush.bf16.msra.mxu0 0
        %782 = vmatpush.bf16.msra.mxu0 %v773
        %783 = vmatmul.bf16.gmra.mxu0 %v770
        %v784 = vpop.f32.mrf.mxu0
        %v785 = vadd.f32 0.0, %v784
        %v786 = vpop.f32.mrf.mxu0
        %v787 = vadd.f32 0.0, %v786
        %788 = vdwg.mxu0
        %v791 = vunpack.c.l.b16 %v729
        %v792 = vunpack.c.l.b16 %v730
        %v793 = vpack.c.b16 %v792, %v791
        %v795 = vsel %vm742, %v793, 0
        %v798 = vsel %vm746, %v735, 0
        %800 = vmatpush.bf16.msra.mxu0 0
        %801 = vmatpush.bf16.msra.mxu0 0
        %802 = vmatpush.bf16.msra.mxu0 0
        %803 = vmatpush.bf16.msra.mxu0 0
        %804 = vmatpush.bf16.msra.mxu0 0
        %805 = vmatpush.bf16.msra.mxu0 0
        %806 = vmatpush.bf16.msra.mxu0 0
        %807 = vmatpush.bf16.msra.mxu0 %v798
        %808 = vmatmul.bf16.gmra.mxu0 %v795
        %v809 = vpop.f32.mrf.mxu0
        %v810 = vadd.f32 0.0, %v809
        %v811 = vpop.f32.mrf.mxu0
        %v812 = vadd.f32 0.0, %v811
        %813 = vdwg.mxu0
        %v816 = vunpack.c.l.b16 %v731
        %v817 = vunpack.c.l.b16 %v732
        %v818 = vpack.c.b16 %v817, %v816
        %v820 = vsel %vm742, %v818, 0
        %v823 = vsel %vm746, %v736, 0
        %825 = vmatpush.bf16.msra.mxu0 0
        %826 = vmatpush.bf16.msra.mxu0 0
        %827 = vmatpush.bf16.msra.mxu0 0
        %828 = vmatpush.bf16.msra.mxu0 0
        %829 = vmatpush.bf16.msra.mxu0 0
        %830 = vmatpush.bf16.msra.mxu0 0
        %831 = vmatpush.bf16.msra.mxu0 0
        %832 = vmatpush.bf16.msra.mxu0 %v823
        %833 = vmatmul.bf16.gmra.mxu0 %v820
        %v834 = vpop.f32.mrf.mxu0
        %v835 = vadd.f32 0.0, %v834
        %v836 = vpop.f32.mrf.mxu0
        %v837 = vadd.f32 0.0, %v836
        %838 = vdwg.mxu0
        %v839 = vpack.c.bf16 %v760, %v760
        %v840 = vpack.c.bf16 %v762, %v762
        %v841 = vpack.c.bf16 %v785, %v785
        %v842 = vpack.c.bf16 %v787, %v787
        %v843 = vpack.c.bf16 %v810, %v810
        %v844 = vpack.c.bf16 %v812, %v812
        %v845 = vpack.c.bf16 %v835, %v835
        %v846 = vpack.c.bf16 %v837, %v837
        %v847 = vld [vmem:[#allocation2] sm:$0xf]
        %v848 = vld [vmem:[#allocation2 + $0x4] sm:$0xf]
        %v849 = vld [vmem:[#allocation2 + $0x8] sm:$0xf]
        %v850 = vld [vmem:[#allocation2 + $0xc] sm:$0xf]
        %v853 = vunpack.c.l.b16 %v839
        %v854 = vunpack.c.l.b16 %v840
        %v855 = vpack.c.b16 %v854, %v853
        %vm856 = vcmask 130048
        %v858 = vsel %vm856, %v855, 0
        %v861 = vsel %vm856, %v847, 0
        %863 = vmatpush.bf16.xpose.msra.mxu0 0
        %864 = vmatpush.bf16.xpose.msra.mxu0 0
        %865 = vmatpush.bf16.xpose.msra.mxu0 0
        %866 = vmatpush.bf16.xpose.msra.mxu0 0
        %867 = vmatpush.bf16.xpose.msra.mxu0 0
        %868 = vmatpush.bf16.xpose.msra.mxu0 0
        %869 = vmatpush.bf16.xpose.msra.mxu0 0
        %870 = vmatpush.bf16.xpose.msra.mxu0 %v861
        %871 = vmatmul.bf16.gmra.mxu0 %v858
        %v872 = vpop.f32.mrf.mxu0
        %v873 = vadd.f32 0.0, %v872
        %v874 = vpop.f32.mrf.mxu0
        %v875 = vadd.f32 0.0, %v874
        %876 = vdwg.mxu0
        %v879 = vunpack.c.l.b16 %v841
        %v880 = vunpack.c.l.b16 %v842
        %v881 = vpack.c.b16 %v880, %v879
        %v883 = vsel %vm856, %v881, 0
        %v886 = vsel %vm856, %v848, 0
        %888 = vmatpush.bf16.xpose.msra.mxu0 0
        %889 = vmatpush.bf16.xpose.msra.mxu0 0
        %890 = vmatpush.bf16.xpose.msra.mxu0 0
        %891 = vmatpush.bf16.xpose.msra.mxu0 0
        %892 = vmatpush.bf16.xpose.msra.mxu0 0
        %893 = vmatpush.bf16.xpose.msra.mxu0 0
        %894 = vmatpush.bf16.xpose.msra.mxu0 0
        %895 = vmatpush.bf16.xpose.msra.mxu0 %v886
        %896 = vmatmul.bf16.gmra.mxu0 %v883
        %v897 = vpop.f32.mrf.mxu0
        %v898 = vadd.f32 0.0, %v897
        %v899 = vpop.f32.mrf.mxu0
        %v900 = vadd.f32 0.0, %v899
        %901 = vdwg.mxu0
        %v904 = vunpack.c.l.b16 %v843
        %v905 = vunpack.c.l.b16 %v844
        %v906 = vpack.c.b16 %v905, %v904
        %v908 = vsel %vm856, %v906, 0
        %v911 = vsel %vm856, %v849, 0
        %913 = vmatpush.bf16.xpose.msra.mxu0 0
        %914 = vmatpush.bf16.xpose.msra.mxu0 0
        %915 = vmatpush.bf16.xpose.msra.mxu0 0
        %916 = vmatpush.bf16.xpose.msra.mxu0 0
        %917 = vmatpush.bf16.xpose.msra.mxu0 0
        %918 = vmatpush.bf16.xpose.msra.mxu0 0
        %919 = vmatpush.bf16.xpose.msra.mxu0 0
        %920 = vmatpush.bf16.xpose.msra.mxu0 %v911
        %921 = vmatmul.bf16.gmra.mxu0 %v908
        %v922 = vpop.f32.mrf.mxu0
        %v923 = vadd.f32 0.0, %v922
        %v924 = vpop.f32.mrf.mxu0
        %v925 = vadd.f32 0.0, %v924
        %926 = vdwg.mxu0
        %v929 = vunpack.c.l.b16 %v845
        %v930 = vunpack.c.l.b16 %v846
        %v931 = vpack.c.b16 %v930, %v929
        %v933 = vsel %vm856, %v931, 0
        %v936 = vsel %vm856, %v850, 0
        %938 = vmatpush.bf16.xpose.msra.mxu0 0
        %939 = vmatpush.bf16.xpose.msra.mxu0 0
        %940 = vmatpush.bf16.xpose.msra.mxu0 0
        %941 = vmatpush.bf16.xpose.msra.mxu0 0
        %942 = vmatpush.bf16.xpose.msra.mxu0 0
        %943 = vmatpush.bf16.xpose.msra.mxu0 0
        %944 = vmatpush.bf16.xpose.msra.mxu0 0
        %945 = vmatpush.bf16.xpose.msra.mxu0 %v936
        %946 = vmatmul.bf16.gmra.mxu0 %v933
        %v947 = vpop.f32.mrf.mxu0
        %v948 = vadd.f32 0.0, %v947
        %v949 = vpop.f32.mrf.mxu0
        %v950 = vadd.f32 0.0, %v949
        %951 = vdwg.mxu0
        %v952 = vsel %vm742, %v760, -inf
        %953 = vmax.xlane.f32.xlu0 %v952
        %v954 = vpop.xlane.xlu0 %953
        %v955 = vsel %vm742, %v762, -inf
        %956 = vmax.xlane.f32.xlu0 %v955
        %v957 = vpop.xlane.xlu0 %956
        %v958 = vsel %vm742, %v785, -inf
        %959 = vmax.xlane.f32.xlu0 %v958
        %v960 = vpop.xlane.xlu0 %959
        %v961 = vsel %vm742, %v787, -inf
        %962 = vmax.xlane.f32.xlu0 %v961
        %v963 = vpop.xlane.xlu0 %962
        %v964 = vsel %vm742, %v810, -inf
        %965 = vmax.xlane.f32.xlu0 %v964
        %v966 = vpop.xlane.xlu0 %965
        %v967 = vsel %vm742, %v812, -inf
        %968 = vmax.xlane.f32.xlu0 %v967
        %v969 = vpop.xlane.xlu0 %968
        %v970 = vsel %vm742, %v835, -inf
        %971 = vmax.xlane.f32.xlu0 %v970
        %v972 = vpop.xlane.xlu0 %971
        %v973 = vsel %vm742, %v837, -inf
        %974 = vmax.xlane.f32.xlu0 %v973
        %v975 = vpop.xlane.xlu0 %974
        %v976 = vsel %vm742, %v873, -inf
        %977 = vmax.xlane.f32.xlu0 %v976
        %v978 = vpop.xlane.xlu0 %977
        %v979 = vsel %vm742, %v875, -inf
        %980 = vmax.xlane.f32.xlu0 %v979
        %v981 = vpop.xlane.xlu0 %980
        %v982 = vsel %vm742, %v898, -inf
        %983 = vmax.xlane.f32.xlu0 %v982
        %v984 = vpop.xlane.xlu0 %983
        %v985 = vsel %vm742, %v900, -inf
        %986 = vmax.xlane.f32.xlu0 %v985
        %v987 = vpop.xlane.xlu0 %986
        %v988 = vsel %vm742, %v923, -inf
        %989 = vmax.xlane.f32.xlu0 %v988
        %v990 = vpop.xlane.xlu0 %989
        %v991 = vsel %vm742, %v925, -inf
        %992 = vmax.xlane.f32.xlu0 %v991
        %v993 = vpop.xlane.xlu0 %992
        %v994 = vsel %vm742, %v948, -inf
        %995 = vmax.xlane.f32.xlu0 %v994
        %v996 = vpop.xlane.xlu0 %995
        %v997 = vsel %vm742, %v950, -inf
        %998 = vmax.xlane.f32.xlu0 %v997
        %v999 = vpop.xlane.xlu0 %998
        %v1000 = vmax.f32 %v954, %v978
        %v1001 = vmax.f32 %v957, %v981
        %v1002 = vmax.f32 %v960, %v984
        %v1003 = vmax.f32 %v963, %v987
        %v1004 = vmax.f32 %v966, %v990
        %v1005 = vmax.f32 %v969, %v993
        %v1006 = vmax.f32 %v972, %v996
        %v1007 = vmax.f32 %v975, %v999
        %v1008 = vsub.f32 %v760, %v1000
        %v1009 = vsub.f32 %v762, %v1001
        %v1010 = vsub.f32 %v785, %v1002
        %v1011 = vsub.f32 %v787, %v1003
        %v1012 = vsub.f32 %v810, %v1004
        %v1013 = vsub.f32 %v812, %v1005
        %v1014 = vsub.f32 %v835, %v1006
        %v1015 = vsub.f32 %v837, %v1007
        %v1016 = vmul.f32 %v1008, 1.442695
        %v1017 = vpow.pop %v1016
        %v1018 = vmul.f32 %v1009, 1.442695
        %v1019 = vpow.pop %v1018
        %v1020 = vmul.f32 %v1010, 1.442695
        %v1021 = vpow.pop %v1020
        %v1022 = vmul.f32 %v1011, 1.442695
        %v1023 = vpow.pop %v1022
        %v1024 = vmul.f32 %v1012, 1.442695
        %v1025 = vpow.pop %v1024
        %v1026 = vmul.f32 %v1013, 1.442695
        %v1027 = vpow.pop %v1026
        %v1028 = vmul.f32 %v1014, 1.442695
        %v1029 = vpow.pop %v1028
        %v1030 = vmul.f32 %v1015, 1.442695
        %v1031 = vpow.pop %v1030
        %v1032 = vsub.f32 %v873, %v1000
        %v1033 = vsub.f32 %v875, %v1001
        %v1034 = vsub.f32 %v898, %v1002
        %v1035 = vsub.f32 %v900, %v1003
        %v1036 = vsub.f32 %v923, %v1004
        %v1037 = vsub.f32 %v925, %v1005
        %v1038 = vsub.f32 %v948, %v1006
        %v1039 = vsub.f32 %v950, %v1007
        %v1040 = vmul.f32 %v1032, 1.442695
        %v1041 = vpow.pop %v1040
        %v1042 = vmul.f32 %v1033, 1.442695
        %v1043 = vpow.pop %v1042
        %v1044 = vmul.f32 %v1034, 1.442695
        %v1045 = vpow.pop %v1044
        %v1046 = vmul.f32 %v1035, 1.442695
        %v1047 = vpow.pop %v1046
        %v1048 = vmul.f32 %v1036, 1.442695
        %v1049 = vpow.pop %v1048
        %v1050 = vmul.f32 %v1037, 1.442695
        %v1051 = vpow.pop %v1050
        %v1052 = vmul.f32 %v1038, 1.442695
        %v1053 = vpow.pop %v1052
        %v1054 = vmul.f32 %v1039, 1.442695
        %v1055 = vpow.pop %v1054
        %v1056 = vsel %vm742, %v1017, 0.0
        %1057 = vadd.xlane.f32.xlu0 %v1056
        %v1058 = vpop.xlane.xlu0 %1057
        %v1059 = vsel %vm742, %v1019, 0.0
        %1060 = vadd.xlane.f32.xlu0 %v1059
        %v1061 = vpop.xlane.xlu0 %1060
        %v1062 = vsel %vm742, %v1021, 0.0
        %1063 = vadd.xlane.f32.xlu0 %v1062
        %v1064 = vpop.xlane.xlu0 %1063
        %v1065 = vsel %vm742, %v1023, 0.0
        %1066 = vadd.xlane.f32.xlu0 %v1065
        %v1067 = vpop.xlane.xlu0 %1066
        %v1068 = vsel %vm742, %v1025, 0.0
        %1069 = vadd.xlane.f32.xlu0 %v1068
        %v1070 = vpop.xlane.xlu0 %1069
        %v1071 = vsel %vm742, %v1027, 0.0
        %1072 = vadd.xlane.f32.xlu0 %v1071
        %v1073 = vpop.xlane.xlu0 %1072
        %v1074 = vsel %vm742, %v1029, 0.0
        %1075 = vadd.xlane.f32.xlu0 %v1074
        %v1076 = vpop.xlane.xlu0 %1075
        %v1077 = vsel %vm742, %v1031, 0.0
        %1078 = vadd.xlane.f32.xlu0 %v1077
        %v1079 = vpop.xlane.xlu0 %1078
        %v1080 = vsel %vm742, %v1041, 0.0
        %1081 = vadd.xlane.f32.xlu0 %v1080
        %v1082 = vpop.xlane.xlu0 %1081
        %v1083 = vsel %vm742, %v1043, 0.0
        %1084 = vadd.xlane.f32.xlu0 %v1083
        %v1085 = vpop.xlane.xlu0 %1084
        %v1086 = vsel %vm742, %v1045, 0.0
        %1087 = vadd.xlane.f32.xlu0 %v1086
        %v1088 = vpop.xlane.xlu0 %1087
        %v1089 = vsel %vm742, %v1047, 0.0
        %1090 = vadd.xlane.f32.xlu0 %v1089
        %v1091 = vpop.xlane.xlu0 %1090
        %v1092 = vsel %vm742, %v1049, 0.0
        %1093 = vadd.xlane.f32.xlu0 %v1092
        %v1094 = vpop.xlane.xlu0 %1093
        %v1095 = vsel %vm742, %v1051, 0.0
        %1096 = vadd.xlane.f32.xlu0 %v1095
        %v1097 = vpop.xlane.xlu0 %1096
        %v1098 = vsel %vm742, %v1053, 0.0
        %1099 = vadd.xlane.f32.xlu0 %v1098
        %v1100 = vpop.xlane.xlu0 %1099
        %v1101 = vsel %vm742, %v1055, 0.0
        %1102 = vadd.xlane.f32.xlu0 %v1101
        %v1103 = vpop.xlane.xlu0 %1102
        %v1104 = vadd.f32 %v1058, %v1082
        %v1105 = vadd.f32 %v1061, %v1085
        %v1106 = vadd.f32 %v1064, %v1088
        %v1107 = vadd.f32 %v1067, %v1091
        %v1108 = vadd.f32 %v1070, %v1094
        %v1109 = vadd.f32 %v1073, %v1097
        %v1110 = vadd.f32 %v1076, %v1100
        %v1111 = vadd.f32 %v1079, %v1103
        %v1112 = vrcp.pop %v1104
        %v1113 = vmul.f32 %v1104, %v1112
        %v1114 = vsub.f32 1.0, %v1113
        %v1115 = vmul.f32 %v1112, %v1114
        %v1116 = vadd.f32 %v1112, %v1115
        %vm1117 = vweird.f32 %v1104
        %vm1118 = vweird.f32 %v1112
        %vm1119 = vmor %vm1117, %vm1118
        %v1120 = vsel %vm1119, %v1112, %v1116
        %v1121 = vand.u32 2147483647, %v1104
        %vm1122 = vcmp.eq.f32.partialorder %v1121, 8.507059e+37
        %v1123 = vand.u32 %v1104, 2147483648
        %v1124 = vor.u32 1.1754944e-38, %v1123
        %v1125 = vsel %vm1122, %v1124, %v1120
        %v1126 = vrcp.pop %v1105
        %v1127 = vmul.f32 %v1105, %v1126
        %v1128 = vsub.f32 1.0, %v1127
        %v1129 = vmul.f32 %v1126, %v1128
        %v1130 = vadd.f32 %v1126, %v1129
        %vm1131 = vweird.f32 %v1105
        %vm1132 = vweird.f32 %v1126
        %vm1133 = vmor %vm1131, %vm1132
        %v1134 = vsel %vm1133, %v1126, %v1130
        %v1135 = vand.u32 2147483647, %v1105
        %vm1136 = vcmp.eq.f32.partialorder %v1135, 8.507059e+37
        %v1137 = vand.u32 %v1105, 2147483648
        %v1138 = vor.u32 1.1754944e-38, %v1137
        %v1139 = vsel %vm1136, %v1138, %v1134
        %v1140 = vrcp.pop %v1106
        %v1141 = vmul.f32 %v1106, %v1140
        %v1142 = vsub.f32 1.0, %v1141
        %v1143 = vmul.f32 %v1140, %v1142
        %v1144 = vadd.f32 %v1140, %v1143
        %vm1145 = vweird.f32 %v1106
        %vm1146 = vweird.f32 %v1140
        %vm1147 = vmor %vm1145, %vm1146
        %v1148 = vsel %vm1147, %v1140, %v1144
        %v1149 = vand.u32 2147483647, %v1106
        %vm1150 = vcmp.eq.f32.partialorder %v1149, 8.507059e+37
        %v1151 = vand.u32 %v1106, 2147483648
        %v1152 = vor.u32 1.1754944e-38, %v1151
        %v1153 = vsel %vm1150, %v1152, %v1148
        %v1154 = vrcp.pop %v1107
        %v1155 = vmul.f32 %v1107, %v1154
        %v1156 = vsub.f32 1.0, %v1155
        %v1157 = vmul.f32 %v1154, %v1156
        %v1158 = vadd.f32 %v1154, %v1157
        %vm1159 = vweird.f32 %v1107
        %vm1160 = vweird.f32 %v1154
        %vm1161 = vmor %vm1159, %vm1160
        %v1162 = vsel %vm1161, %v1154, %v1158
        %v1163 = vand.u32 2147483647, %v1107
        %vm1164 = vcmp.eq.f32.partialorder %v1163, 8.507059e+37
        %v1165 = vand.u32 %v1107, 2147483648
        %v1166 = vor.u32 1.1754944e-38, %v1165
        %v1167 = vsel %vm1164, %v1166, %v1162
        %v1168 = vrcp.pop %v1108
        %v1169 = vmul.f32 %v1108, %v1168
        %v1170 = vsub.f32 1.0, %v1169
        %v1171 = vmul.f32 %v1168, %v1170
        %v1172 = vadd.f32 %v1168, %v1171
        %vm1173 = vweird.f32 %v1108
        %vm1174 = vweird.f32 %v1168
        %vm1175 = vmor %vm1173, %vm1174
        %v1176 = vsel %vm1175, %v1168, %v1172
        %v1177 = vand.u32 2147483647, %v1108
        %vm1178 = vcmp.eq.f32.partialorder %v1177, 8.507059e+37
        %v1179 = vand.u32 %v1108, 2147483648
        %v1180 = vor.u32 1.1754944e-38, %v1179
        %v1181 = vsel %vm1178, %v1180, %v1176
        %v1182 = vrcp.pop %v1109
        %v1183 = vmul.f32 %v1109, %v1182
        %v1184 = vsub.f32 1.0, %v1183
        %v1185 = vmul.f32 %v1182, %v1184
        %v1186 = vadd.f32 %v1182, %v1185
        %vm1187 = vweird.f32 %v1109
        %vm1188 = vweird.f32 %v1182
        %vm1189 = vmor %vm1187, %vm1188
        %v1190 = vsel %vm1189, %v1182, %v1186
        %v1191 = vand.u32 2147483647, %v1109
        %vm1192 = vcmp.eq.f32.partialorder %v1191, 8.507059e+37
        %v1193 = vand.u32 %v1109, 2147483648
        %v1194 = vor.u32 1.1754944e-38, %v1193
        %v1195 = vsel %vm1192, %v1194, %v1190
        %v1196 = vrcp.pop %v1110
        %v1197 = vmul.f32 %v1110, %v1196
        %v1198 = vsub.f32 1.0, %v1197
        %v1199 = vmul.f32 %v1196, %v1198
        %v1200 = vadd.f32 %v1196, %v1199
        %vm1201 = vweird.f32 %v1110
        %vm1202 = vweird.f32 %v1196
        %vm1203 = vmor %vm1201, %vm1202
        %v1204 = vsel %vm1203, %v1196, %v1200
        %v1205 = vand.u32 2147483647, %v1110
        %vm1206 = vcmp.eq.f32.partialorder %v1205, 8.507059e+37
        %v1207 = vand.u32 %v1110, 2147483648
        %v1208 = vor.u32 1.1754944e-38, %v1207
        %v1209 = vsel %vm1206, %v1208, %v1204
        %v1210 = vrcp.pop %v1111
        %v1211 = vmul.f32 %v1111, %v1210
        %v1212 = vsub.f32 1.0, %v1211
        %v1213 = vmul.f32 %v1210, %v1212
        %v1214 = vadd.f32 %v1210, %v1213
        %vm1215 = vweird.f32 %v1111
        %vm1216 = vweird.f32 %v1210
        %vm1217 = vmor %vm1215, %vm1216
        %v1218 = vsel %vm1217, %v1210, %v1214
        %v1219 = vand.u32 2147483647, %v1111
        %vm1220 = vcmp.eq.f32.partialorder %v1219, 8.507059e+37
        %v1221 = vand.u32 %v1111, 2147483648
        %v1222 = vor.u32 1.1754944e-38, %v1221
        %v1223 = vsel %vm1220, %v1222, %v1218
        %v1224 = vmul.f32 %v1017, %v1125
        %v1225 = vmul.f32 %v1019, %v1139
        %v1226 = vmul.f32 %v1021, %v1153
        %v1227 = vmul.f32 %v1023, %v1167
        %v1228 = vmul.f32 %v1025, %v1181
        %v1229 = vmul.f32 %v1027, %v1195
        %v1230 = vmul.f32 %v1029, %v1209
        %v1231 = vmul.f32 %v1031, %v1223
        %v1232 = vmul.f32 %v1041, %v1125
        %v1233 = vmul.f32 %v1043, %v1139
        %v1234 = vmul.f32 %v1045, %v1153
        %v1235 = vmul.f32 %v1047, %v1167
        %v1236 = vmul.f32 %v1049, %v1181
        %v1237 = vmul.f32 %v1051, %v1195
        %v1238 = vmul.f32 %v1053, %v1209
        %v1239 = vmul.f32 %v1055, %v1223
        %v1240 = vpack.c.bf16 %v1224, %v1224
        %v1241 = vpack.c.bf16 %v1225, %v1225
        %v1242 = vpack.c.bf16 %v1226, %v1226
        %v1243 = vpack.c.bf16 %v1227, %v1227
        %v1244 = vpack.c.bf16 %v1228, %v1228
        %v1245 = vpack.c.bf16 %v1229, %v1229
        %v1246 = vpack.c.bf16 %v1230, %v1230
        %v1247 = vpack.c.bf16 %v1231, %v1231
        %v1248 = vld [vmem:[%s400] sm:$0xf]
        %v1249 = vld [vmem:[%s400 + $0x4] sm:$0xf]
        %v1250 = vld [vmem:[%s400 + $0x8] sm:$0xf]
        %v1251 = vld [vmem:[%s400 + $0xc] sm:$0xf]
        %v1252 = vpack.c.bf16 %v1232, %v1232
        %v1253 = vpack.c.bf16 %v1233, %v1233
        %v1254 = vpack.c.bf16 %v1234, %v1234
        %v1255 = vpack.c.bf16 %v1235, %v1235
        %v1256 = vpack.c.bf16 %v1236, %v1236
        %v1257 = vpack.c.bf16 %v1237, %v1237
        %v1258 = vpack.c.bf16 %v1238, %v1238
        %v1259 = vpack.c.bf16 %v1239, %v1239
        %v1260 = vld [vmem:[#allocation3] sm:$0xf]
        %v1261 = vld [vmem:[#allocation3 + $0x4] sm:$0xf]
        %v1262 = vld [vmem:[#allocation3 + $0x8] sm:$0xf]
        %v1263 = vld [vmem:[#allocation3 + $0xc] sm:$0xf]
        %v1266 = vunpack.c.l.b16 %v1252
        %v1267 = vunpack.c.l.b16 %v1253
        %v1268 = vpack.c.b16 %v1267, %v1266
        %v1270 = vsel %vm742, %v1268, 0
        %v1273 = vsel %vm746, %v1260, 0
        %1275 = vmatpush.bf16.msra.mxu0 0
        %1276 = vmatpush.bf16.msra.mxu0 0
        %1277 = vmatpush.bf16.msra.mxu0 0
        %1278 = vmatpush.bf16.msra.mxu0 0
        %1279 = vmatpush.bf16.msra.mxu0 0
        %1280 = vmatpush.bf16.msra.mxu0 0
        %1281 = vmatpush.bf16.msra.mxu0 0
        %1282 = vmatpush.bf16.msra.mxu0 %v1273
        %1283 = vmatmul.bf16.gmra.mxu0 %v1270
        %v1284 = vpop.f32.mrf.mxu0
        %v1285 = vadd.f32 0.0, %v1284
        %v1286 = vpop.f32.mrf.mxu0
        %v1287 = vadd.f32 0.0, %v1286
        %1288 = vdwg.mxu0
        %v1291 = vunpack.c.l.b16 %v1254
        %v1292 = vunpack.c.l.b16 %v1255
        %v1293 = vpack.c.b16 %v1292, %v1291
        %v1295 = vsel %vm742, %v1293, 0
        %v1298 = vsel %vm746, %v1261, 0
        %1300 = vmatpush.bf16.msra.mxu0 0
        %1301 = vmatpush.bf16.msra.mxu0 0
        %1302 = vmatpush.bf16.msra.mxu0 0
        %1303 = vmatpush.bf16.msra.mxu0 0
        %1304 = vmatpush.bf16.msra.mxu0 0
        %1305 = vmatpush.bf16.msra.mxu0 0
        %1306 = vmatpush.bf16.msra.mxu0 0
        %1307 = vmatpush.bf16.msra.mxu0 %v1298
        %1308 = vmatmul.bf16.gmra.mxu0 %v1295
        %v1309 = vpop.f32.mrf.mxu0
        %v1310 = vadd.f32 0.0, %v1309
        %v1311 = vpop.f32.mrf.mxu0
        %v1312 = vadd.f32 0.0, %v1311
        %1313 = vdwg.mxu0
        %v1316 = vunpack.c.l.b16 %v1256
        %v1317 = vunpack.c.l.b16 %v1257
        %v1318 = vpack.c.b16 %v1317, %v1316
        %v1320 = vsel %vm742, %v1318, 0
        %v1323 = vsel %vm746, %v1262, 0
        %1325 = vmatpush.bf16.msra.mxu0 0
        %1326 = vmatpush.bf16.msra.mxu0 0
        %1327 = vmatpush.bf16.msra.mxu0 0
        %1328 = vmatpush.bf16.msra.mxu0 0
        %1329 = vmatpush.bf16.msra.mxu0 0
        %1330 = vmatpush.bf16.msra.mxu0 0
        %1331 = vmatpush.bf16.msra.mxu0 0
        %1332 = vmatpush.bf16.msra.mxu0 %v1323
        %1333 = vmatmul.bf16.gmra.mxu0 %v1320
        %v1334 = vpop.f32.mrf.mxu0
        %v1335 = vadd.f32 0.0, %v1334
        %v1336 = vpop.f32.mrf.mxu0
        %v1337 = vadd.f32 0.0, %v1336
        %1338 = vdwg.mxu0
        %v1341 = vunpack.c.l.b16 %v1258
        %v1342 = vunpack.c.l.b16 %v1259
        %v1343 = vpack.c.b16 %v1342, %v1341
        %v1345 = vsel %vm742, %v1343, 0
        %v1348 = vsel %vm746, %v1263, 0
        %1350 = vmatpush.bf16.msra.mxu0 0
        %1351 = vmatpush.bf16.msra.mxu0 0
        %1352 = vmatpush.bf16.msra.mxu0 0
        %1353 = vmatpush.bf16.msra.mxu0 0
        %1354 = vmatpush.bf16.msra.mxu0 0
        %1355 = vmatpush.bf16.msra.mxu0 0
        %1356 = vmatpush.bf16.msra.mxu0 0
        %1357 = vmatpush.bf16.msra.mxu0 %v1348
        %1358 = vmatmul.bf16.gmra.mxu0 %v1345
        %v1359 = vpop.f32.mrf.mxu0
        %v1360 = vadd.f32 0.0, %v1359
        %v1361 = vpop.f32.mrf.mxu0
        %v1362 = vadd.f32 0.0, %v1361
        %1363 = vdwg.mxu0
        %v1366 = vunpack.c.l.b16 %v1240
        %v1367 = vunpack.c.l.b16 %v1241
        %v1368 = vpack.c.b16 %v1367, %v1366
        %v1370 = vsel %vm742, %v1368, 0
        %v1373 = vsel %vm746, %v1248, 0
        %1375 = vmatpush.bf16.msra.mxu0 0
        %1376 = vmatpush.bf16.msra.mxu0 0
        %1377 = vmatpush.bf16.msra.mxu0 0
        %1378 = vmatpush.bf16.msra.mxu0 0
        %1379 = vmatpush.bf16.msra.mxu0 0
        %1380 = vmatpush.bf16.msra.mxu0 0
        %1381 = vmatpush.bf16.msra.mxu0 0
        %1382 = vmatpush.bf16.msra.mxu0 %v1373
        %1383 = vmatmul.bf16.gmra.mxu0 %v1370
        %v1384 = vpop.f32.mrf.mxu0
        %v1385 = vadd.f32 %v1285, %v1384
        %v1386 = vpop.f32.mrf.mxu0
        %v1387 = vadd.f32 %v1287, %v1386
        %1388 = vdwg.mxu0
        %v1391 = vunpack.c.l.b16 %v1242
        %v1392 = vunpack.c.l.b16 %v1243
        %v1393 = vpack.c.b16 %v1392, %v1391
        %v1395 = vsel %vm742, %v1393, 0
        %v1398 = vsel %vm746, %v1249, 0
        %1400 = vmatpush.bf16.msra.mxu0 0
        %1401 = vmatpush.bf16.msra.mxu0 0
        %1402 = vmatpush.bf16.msra.mxu0 0
        %1403 = vmatpush.bf16.msra.mxu0 0
        %1404 = vmatpush.bf16.msra.mxu0 0
        %1405 = vmatpush.bf16.msra.mxu0 0
        %1406 = vmatpush.bf16.msra.mxu0 0
        %1407 = vmatpush.bf16.msra.mxu0 %v1398
        %1408 = vmatmul.bf16.gmra.mxu0 %v1395
        %v1409 = vpop.f32.mrf.mxu0
        %v1410 = vadd.f32 %v1310, %v1409
        %v1411 = vpop.f32.mrf.mxu0
        %v1412 = vadd.f32 %v1312, %v1411
        %1413 = vdwg.mxu0
        %v1416 = vunpack.c.l.b16 %v1244
        %v1417 = vunpack.c.l.b16 %v1245
        %v1418 = vpack.c.b16 %v1417, %v1416
        %v1420 = vsel %vm742, %v1418, 0
        %v1423 = vsel %vm746, %v1250, 0
        %1425 = vmatpush.bf16.msra.mxu0 0
        %1426 = vmatpush.bf16.msra.mxu0 0
        %1427 = vmatpush.bf16.msra.mxu0 0
        %1428 = vmatpush.bf16.msra.mxu0 0
        %1429 = vmatpush.bf16.msra.mxu0 0
        %1430 = vmatpush.bf16.msra.mxu0 0
        %1431 = vmatpush.bf16.msra.mxu0 0
        %1432 = vmatpush.bf16.msra.mxu0 %v1423
        %1433 = vmatmul.bf16.gmra.mxu0 %v1420
        %v1434 = vpop.f32.mrf.mxu0
        %v1435 = vadd.f32 %v1335, %v1434
        %v1436 = vpop.f32.mrf.mxu0
        %v1437 = vadd.f32 %v1337, %v1436
        %1438 = vdwg.mxu0
        %v1441 = vunpack.c.l.b16 %v1246
        %v1442 = vunpack.c.l.b16 %v1247
        %v1443 = vpack.c.b16 %v1442, %v1441
        %v1445 = vsel %vm742, %v1443, 0
        %v1448 = vsel %vm746, %v1251, 0
        %1450 = vmatpush.bf16.msra.mxu0 0
        %1451 = vmatpush.bf16.msra.mxu0 0
        %1452 = vmatpush.bf16.msra.mxu0 0
        %1453 = vmatpush.bf16.msra.mxu0 0
        %1454 = vmatpush.bf16.msra.mxu0 0
        %1455 = vmatpush.bf16.msra.mxu0 0
        %1456 = vmatpush.bf16.msra.mxu0 0
        %1457 = vmatpush.bf16.msra.mxu0 %v1448
        %1458 = vmatmul.bf16.gmra.mxu0 %v1445
        %v1459 = vpop.f32.mrf.mxu0
        %v1460 = vadd.f32 %v1360, %v1459
        %v1461 = vpop.f32.mrf.mxu0
        %v1462 = vadd.f32 %v1362, %v1461
        %1463 = vdwg.mxu0
        %1466 = vrot.lane.b32.xlu0 %v1410, 8
        %v1467 = vpop.permute.xlu0 %1466
        %1468 = vrot.lane.b32.xlu0 %v1412, 8
        %v1469 = vpop.permute.xlu0 %1468
        %1474 = vrot.lane.b32.xlu0 %v1435, 16
        %v1475 = vpop.permute.xlu0 %1474
        %1476 = vrot.lane.b32.xlu0 %v1437, 16
        %v1477 = vpop.permute.xlu0 %1476
        %1482 = vrot.lane.b32.xlu0 %v1460, 24
        %v1483 = vpop.permute.xlu0 %1482
        %1484 = vrot.lane.b32.xlu0 %v1462, 24
        %v1485 = vpop.permute.xlu0 %1484
        %v1488 = vsel %vm742, %v1385, %v1467
        %v1489 = vsel %vm742, %v1387, %v1469
        %v1490 = vsel %vm856, %v1488, %v1475
        %v1491 = vsel %vm856, %v1489, %v1477
        %vm1492 = vcmask 195584
        %v1493 = vsel %vm1492, %v1490, %v1483
        %v1494 = vsel %vm1492, %v1491, %v1485
        %v1495 = vpack.c.bf16 %v1493, %v1493
        %v1496 = vpack.c.bf16 %v1494, %v1494
        %vm1497 = vcmask 257024
        %1498 = vst.msk [vmem:[%s373] sm:$0xf] %vm1497, %v1495
        %1499 = vst.msk [vmem:[%s373 + $0x4] sm:$0xf] %vm1497, %v1496
        %v1500 = vsel %vm742, %v1224, 0.0
        %v1501 = vsel %vm742, %v1226, 0.0
        %v1502 = vadd.f32 %v1500, %v1501
        %v1503 = vsel %vm742, %v1228, 0.0
        %v1504 = vadd.f32 %v1502, %v1503
        %v1505 = vsel %vm742, %v1230, 0.0
        %v1506 = vadd.f32 %v1504, %v1505
        %v1507 = vsel %vm742, %v1225, 0.0
        %v1508 = vsel %vm742, %v1227, 0.0
        %v1509 = vadd.f32 %v1507, %v1508
        %v1510 = vsel %vm742, %v1229, 0.0
        %v1511 = vadd.f32 %v1509, %v1510
        %v1512 = vsel %vm742, %v1231, 0.0
        %v1513 = vadd.f32 %v1511, %v1512
        %v1514 = vsel %vm742, %v1232, 0.0
        %v1515 = vsel %vm742, %v1234, 0.0
        %v1516 = vadd.f32 %v1514, %v1515
        %v1517 = vsel %vm742, %v1236, 0.0
        %v1518 = vadd.f32 %v1516, %v1517
        %v1519 = vsel %vm742, %v1238, 0.0
        %v1520 = vadd.f32 %v1518, %v1519
        %v1521 = vsel %vm742, %v1233, 0.0
        %v1522 = vsel %vm742, %v1235, 0.0
        %v1523 = vadd.f32 %v1521, %v1522
        %v1524 = vsel %vm742, %v1237, 0.0
        %v1525 = vadd.f32 %v1523, %v1524
        %v1526 = vsel %vm742, %v1239, 0.0
        %v1527 = vadd.f32 %v1525, %v1526
        %1530 = vrot.lane.b32.xlu0 %v1520, 8
        %v1531 = vpop.permute.xlu0 %1530
        %1532 = vrot.lane.b32.xlu0 %v1527, 8
        %v1533 = vpop.permute.xlu0 %1532
        %v1536 = vsel %vm742, %v1506, %v1531
        %v1537 = vsel %vm742, %v1513, %v1533
        %v1538 = vmul.f32 %v1536, 0.25
        %v1539 = vmul.f32 %v1537, 0.25
        %1540 = vst.msk [vmem:[%s380] sm:$0xff] %vm856, %v1538
        %1541 = vst.msk [vmem:[%s380 + $0x8] sm:$0xff] %vm856, %v1539
        %s1542 = sand.u32 %s205, 1
        %s1543 = scalar_lea.sflag [#allocation5], %s1542
        %s1544 = sand.u32 %s205, 1
        %s1545 = smul.addr %s1544, 8
        %s1546 = scalar_lea.vmem [#allocation4], %s1545
        %s1547 = sand.u32 %s233, 1
        %s1548 = scalar_lea.sflag [#allocation7], %s1547
        %s1549 = sand.u32 %s233, 1
        %s1550 = smul.addr %s1549, 16
        %s1551 = scalar_lea.vmem [#allocation6], %s1550
        // Predicated region
        $region49: #{tpu_custom_call.1} parent=43 // pred_check
          %p1552 = pneg %p215
        $region50: #{tpu_custom_call.1} parent=43 // pred_check_branch
          %1554 = sbr.rel (%p1552) target = $region52
        $region51: #{tpu_custom_call.1} parent=43 // pred_region
          %s1555 = smul.u32 2, %s30
          %1557 = vsyncadd %s1543, 0
          %s1558 = smul.addr %s29, 2
          %s1559 = sadd.s32 %s1555, %s1558
          %s1560 = smul.addr %s1559, 4
          %s1561 = scalar_lea.hbm %s6, %s1560
          %s1562 = sshll.u32 %s1546, 4
          %s1563 = int_to_ptr.vmem [resolvable:$true] %s1562
          %s1564 = sshll.u32 %s1561, 4
          %s1565 = int_to_ptr.hbm [resolvable:$true] %s1564
          %1570 = dma.vmem_to_hbm [thread:$0]  %s1563, 128, %s1565, %s1543, 64, 64, 4
        $region52: #{tpu_custom_call.1} parent=43 // pred_fallthru
          _
        // Predicated region
        $region53: #{tpu_custom_call.1} parent=43 // pred_check
          %p1571 = pneg %p243
        $region54: #{tpu_custom_call.1} parent=43 // pred_check_branch
          %1573 = sbr.rel (%p1571) target = $region56
        $region55: #{tpu_custom_call.1} parent=43 // pred_region
          %s1574 = smul.u32 2, %s30
          %1576 = vsyncadd %s1548, 0
          %s1577 = smul.addr %s29, 2
          %s1578 = sadd.s32 %s1574, %s1577
          %s1579 = smul.addr %s1578, 8
          %s1580 = scalar_lea.hbm %s7, %s1579
          %s1581 = sshll.u32 %s1551, 4
          %s1582 = int_to_ptr.vmem [resolvable:$true] %s1581
          %s1583 = sshll.u32 %s1580, 4
          %s1584 = int_to_ptr.hbm [resolvable:$true] %s1583
          %1589 = dma.vmem_to_hbm [thread:$0]  %s1582, 256, %s1584, %s1548, 128, 128, 8
        $region56: #{tpu_custom_call.1} parent=43 // pred_fallthru
          _
      $region44: #{tpu_custom_call.1} parent=5 // pred_fallthru
        _
      %p1590 = scmp.le.s32.totalorder 2, %s20
      // Predicated region
      $region57: #{tpu_custom_call.1} parent=5 // pred_check
        %p1591 = pneg %p1590
      $region58: #{tpu_custom_call.1} parent=5 // pred_check_branch
        %1593 = sbr.rel (%p1591) target = $region60
      $region59: #{tpu_custom_call.1} parent=5 // pred_region
        %s1594 = ssub.s32 %s20, 2
        // Predicated region
        $region61: #{tpu_custom_call.1} parent=59 // pred_check
          %p1595 = pneg %p221
        $region62: #{tpu_custom_call.1} parent=59 // pred_check_branch
          %1597 = sbr.rel (%p1595) target = $region64
        $region63: #{tpu_custom_call.1} parent=59 // pred_region
          %s1598 = sand.u32 %s206, 1
          %s1599 = scalar_lea.sflag [#allocation5], %s1598
          %s1600 = sand.u32 %s206, 1
          %s1601 = smul.addr %s1600, 8
          %s1602 = scalar_lea.vmem [#allocation4], %s1601
          %1604 = dma.done %s1599, 128
        $region64: #{tpu_custom_call.1} parent=59 // pred_fallthru
          _
        // Predicated region
        $region65: #{tpu_custom_call.1} parent=59 // pred_check
          %p1605 = pneg %p249
        $region66: #{tpu_custom_call.1} parent=59 // pred_check_branch
          %1607 = sbr.rel (%p1605) target = $region68
        $region67: #{tpu_custom_call.1} parent=59 // pred_region
          %s1608 = sand.u32 %s234, 1
          %s1609 = scalar_lea.sflag [#allocation7], %s1608
          %s1610 = sand.u32 %s234, 1
          %s1611 = smul.addr %s1610, 16
          %s1612 = scalar_lea.vmem [#allocation6], %s1611
          %1614 = dma.done %s1609, 256
        $region68: #{tpu_custom_call.1} parent=59 // pred_fallthru
          _
      $region60: #{tpu_custom_call.1} parent=5 // pred_fallthru
        _
    $region6: #{tpu_custom_call.1} parent=1 // loop_footer
      %s24 = sadd.s32 1, %s20
    $region7: #{tpu_custom_call.1} parent=1 // loop_footer_branch
      %19 = sbr.rel target = $region3
    $region8: #{tpu_custom_call.1} parent=1 // loop_exit
      _
    %1615 = vsyncpa [#allocation5], 1
    %s1616 = scalar_lea.sflag [#allocation5], 1
    %1617 = vsyncpa %s1616, 1
    %1618 = vsyncpa [#allocation7], 1
    %s1619 = scalar_lea.sflag [#allocation7], 1
    %1620 = vsyncpa %s1619, 1

</llo_original>
